<compile_context>
chip_gen: v5e
topology: v5e:2x2
jax: 0.10.0
libtpu: 0.0.40
codegen_flags: <defaults>
</compile_context>

<pallas_src>
import jax
import jax.numpy as jnp
from jax.experimental import pallas as pl
from jax.experimental.pallas import tpu as pltpu


def _make_kernel(precision):
    def _spatial_attention_kernel(x_ref, m_ref, o_ref):
        # x_ref : (NB, C, HW)   channels on sublanes, flattened spatial dim on
        #                       lanes (lane-dense).  C=4 half-fills sublanes;
        #                       acceptable here, pick C blocks %8 if C grows.
        # m_ref : (2*HW, HW)    conv-as-GEMM matrix; constant block index so it
        #                       stays VMEM resident (no per-step re-DMA).
        # o_ref : (NB, 1, HW)   lane-dense output tile.
        x = x_ref[...]
        s = jnp.sum(x, axis=1)                       # (NB, HW); 1/C folded in M
        mx = jnp.max(x, axis=1)                      # (NB, HW)
        lhs = jnp.concatenate([s, mx], axis=-1).astype(m_ref.dtype)  # (NB, 2HW)
        # Single fused GEMM on the MXU (K = 2*HW) instead of two K = HW dots.
        acc = jnp.dot(lhs, m_ref[...],
                      preferred_element_type=jnp.float32,
                      precision=precision)
        o_ref[...] = jax.nn.sigmoid(acc)[:, None, :].astype(o_ref.dtype)

    return _spatial_attention_kernel


def spatial_attention_matrix(weight, H, W, C):
    """Lower a (1, 2, K, K) 'same' conv weight to a (2*H*W, H*W) GEMM matrix.

    M[(c, h', w'), (h, w)] = weight[0, c, h'-h+P, w'-w+P] when that kernel tap
    is in range, else 0, and the avg-branch rows (c == 0) are pre-scaled by
    1/C, so that  out_flat = concat([sum_c(x), max_c(x)]) @ M  equals
    conv2d(cat([mean_c(x), max_c(x)]), weight, padding=P, bias=False).
    Pure weight preprocessing: compute once per weight set and cache it.
    """
    K = weight.shape[-1]
    P = (K - 1) // 2
    hp = jnp.arange(H)[:, None, None, None]       # input row  h'
    wp = jnp.arange(W)[None, :, None, None]       # input col  w'
    ho = jnp.arange(H)[None, None, :, None]       # output row h
    wo = jnp.arange(W)[None, None, None, :]       # output col w
    di = hp - ho + P
    dj = wp - wo + P
    valid = (di >= 0) & (di < K) & (dj >= 0) & (dj < K)
    di_c = jnp.clip(di, 0, K - 1)
    dj_c = jnp.clip(dj, 0, K - 1)
    mats = []
    for c, scale in ((0, 1.0 / C), (1, 1.0)):      # fold 1/C mean into rows
        wt = weight[0, c].astype(jnp.float32) * scale
        mc = jnp.where(valid, wt[di_c, dj_c], 0.0)     # (H, W, H, W)
        mats.append(mc.reshape(H * W, H * W))
    return jnp.concatenate(mats, axis=0)           # (2*H*W, H*W)


def _num_tensorcores():
    # v7x has 2 TensorCores per chip; v5e/v6e have 1.
    try:
        kind = jax.devices()[0].device_kind.lower()
    except Exception:
        return 1
    return 2 if "v7" in kind else 1


def _default_batch_block(N, num_cores):
    bb = min(N, 256)                        # fill MXU M-dim / sublanes
    if num_cores > 1 and N >= num_cores:    # keep >= 1 parallel step per TC
        bb = min(bb, N // num_cores)
    while N % bb:                           # largest divisor of N <= bb
        bb -= 1
    return bb


def spatial_attention(x, weight, kernel_size=7, m=None, batch_block=None,
                      precision=jax.lax.Precision.HIGHEST):
    assert kernel_size in (3, 7), "kernel size must be 3 or 7"
    N, C, H, W = x.shape
    assert weight.shape == (1, 2, kernel_size, kernel_size)
    HW = H * W

    if m is None:
        m = spatial_attention_matrix(weight, H, W, C)
    if batch_block is None:
        batch_block = _default_batch_block(N, _num_tensorcores())
    bb = batch_block
    assert N % bb == 0

    x_flat = x.reshape(N, C, HW)            # layout plumbing (free reshape)

    # VMEM budget: the pipeline double-buffers M even though its block index is
    # constant, plus double-buffered x / out tiles.
    itemsize = x.dtype.itemsize
    m_bytes = 2 * HW * HW * 4
    tile_bytes = bb * C * HW * itemsize + bb * HW * itemsize
    vmem_need = 2 * m_bytes + 2 * tile_bytes
    vmem_limit = min(max(2 * vmem_need, 8 << 20), 32 << 20)
    # TODO(synk): for large H*W the dense (2HW, HW) matrix stops fitting VMEM
    # (v7x first: 64 MiB physical / 32 MiB scoped); single-buffer it
    # (pipeline_mode=pl.Buffered(1)), tile its output dim with an extra grid
    # axis, or switch to a banded formulation.
    assert vmem_need <= vmem_limit, (
        f"conv-as-GEMM matrix needs ~{vmem_need >> 20} MiB VMEM; tile it for "
        "this feature-map size")

    out = pl.pallas_call(
        _make_kernel(precision),
        out_shape=jax.ShapeDtypeStruct((N, 1, HW), x.dtype),
        grid=(N // bb,),
        in_specs=[
            pl.BlockSpec((bb, C, HW), lambda b: (b, 0, 0)),
            # Constant block index -> M stays resident in VMEM across steps.
            pl.BlockSpec((2 * HW, HW), lambda b: (0, 0)),
        ],
        out_specs=pl.BlockSpec((bb, 1, HW), lambda b: (b, 0, 0)),
        compiler_params=pltpu.CompilerParams(
            dimension_semantics=("parallel",),
            vmem_limit_bytes=vmem_limit),
    )(x_flat, m)

    return out.reshape(N, 1, H, W)


def _reference(x, weight, kernel_size=7):
    # Pure-JAX reference mirroring the PyTorch forward.
    P = (kernel_size - 1) // 2
    avg = jnp.mean(x, axis=1, keepdims=True)
    mx = jnp.max(x, axis=1, keepdims=True)
    xin = jnp.concatenate([avg, mx], axis=1)
    out = jax.lax.conv_general_dilated(
        xin, weight, window_strides=(1, 1),
        padding=((P, P), (P, P)),
        dimension_numbers=("NCHW", "OIHW", "NCHW"),
        precision=jax.lax.Precision.HIGHEST)
    return jax.nn.sigmoid(out)


if __name__ == "__main__":
    key = jax.random.PRNGKey(0)
    kx, kw = jax.random.split(key)

    N, C, H, W = 2, 4, 16, 16
    K = 7

    x = jax.random.normal(kx, (N, C, H, W), dtype=jnp.float32)
    # Deterministic synthetic conv weight (kaiming-ish scale), no bias.
    weight = jax.random.normal(kw, (1, 2, K, K), dtype=jnp.float32) * 0.1

    # Weight preprocessing done once per weight set (cache alongside params),
    # keeping the Toeplitz build off the per-forward path.
    m = jax.block_until_ready(spatial_attention_matrix(weight, H, W, C))

    out = spatial_attention(x, weight, kernel_size=K, m=m)
    out = jax.block_until_ready(out)

    ref = _reference(x, weight, kernel_size=K)
    assert out.shape == (N, 1, H, W)
    max_err = float(jnp.max(jnp.abs(out - ref)))
    assert jnp.allclose(out, ref, atol=1e-5, rtol=1e-5), max_err

    print("KERNEL_OK")
</pallas_src>

<mosaic_0001>
module attributes {stable_mosaic.version = 11 : i64} {
  func.func @_spatial_attention_kernel(%arg0: i32, %arg1: memref<2x4x256xf32, #tpu.memory_space<vmem>>, %arg2: memref<512x256xf32, #tpu.memory_space<vmem>>, %arg3: memref<2x1x256xf32, #tpu.memory_space<vmem>>) attributes {dimension_semantics = [#tpu.dimension_semantics<parallel>], iteration_bounds = array<i64: 1>, scalar_prefetch = 0 : i64, scratch_operands = 0 : i64, tpu.core_type = #tpu.core_type<tc>, window_params = [{transform_indices = @transform_0, window_bounds = array<i64: 2, 4, 256>}, {pipeline_mode = #tpu.pipeline_mode<synchronous>, transform_indices = @transform_1, window_bounds = array<i64: 512, 256>}, {transform_indices = @transform_2, window_bounds = array<i64: 2, 1, 256>}]} {
    %c0 = arith.constant 0 : index
    %c0_0 = arith.constant 0 : index
    %c0_1 = arith.constant 0 : index
    %0 = vector.load %arg1[%c0, %c0_0, %c0_1] : memref<2x4x256xf32, #tpu.memory_space<vmem>>, vector<2x4x256xf32>
    %cst = arith.constant dense<0.000000e+00> : vector<2x256xf32>
    %1 = vector.multi_reduction <add>, %0, %cst [1] : vector<2x4x256xf32> to vector<2x256xf32>
    %cst_2 = arith.constant dense<0xFF800000> : vector<2x256xf32>
    %2 = vector.multi_reduction <maximumf>, %0, %cst_2 [1] : vector<2x4x256xf32> to vector<2x256xf32>
    %3 = tpu.concatenate %1, %2 in 1 : vector<2x256xf32>, vector<2x256xf32> -> vector<2x512xf32>
    %c0_3 = arith.constant 0 : index
    %c0_4 = arith.constant 0 : index
    %4 = vector.load %arg2[%c0_3, %c0_4] : memref<512x256xf32, #tpu.memory_space<vmem>>, vector<512x256xf32>
    %cst_5 = arith.constant dense<0.000000e+00> : vector<2x256xf32>
    %5 = tpu.matmul %3, %4, %cst_5 {dimension_numbers = #tpu.dot_dimension_numbers<[1], [0], [0], [1], [0, 0, 1, 1], [], []>, precision = #tpu.contract_precision<fp32>} : vector<2x512xf32>, vector<512x256xf32>, vector<2x256xf32> -> vector<2x256xf32>
    %6 = arith.negf %5 : vector<2x256xf32>
    %7 = math.exp %6 : vector<2x256xf32>
    %cst_6 = arith.constant 1.000000e+00 : f32
    %8 = vector.broadcast %cst_6 : f32 to vector<2x256xf32>
    %9 = arith.addf %8, %7 : vector<2x256xf32>
    %10 = arith.divf %8, %9 : vector<2x256xf32>
    %11 = vector.shape_cast %10 : vector<2x256xf32> to vector<2x1x256xf32>
    %c0_7 = arith.constant 0 : index
    %c0_8 = arith.constant 0 : index
    %c0_9 = arith.constant 0 : index
    %12 = vector.load %arg3[%c0_7, %c0_8, %c0_9] : memref<2x1x256xf32, #tpu.memory_space<vmem>>, vector<2x1x256xf32>
    tpu.vector_store %arg3[%c0_7, %c0_8, %c0_9], %11 {strides = array<i32>} : memref<2x1x256xf32, #tpu.memory_space<vmem>>, vector<2x1x256xf32>,
    return
  }
  func.func @transform_0(%arg0: i32) -> (i32, i32, i32) {
    %c0_i32 = arith.constant 0 : i32
    %c0_i32_0 = arith.constant 0 : i32
    %c0_i32_1 = arith.constant 0 : i32
    return %arg0, %c0_i32, %c0_i32_0 : i32, i32, i32
  }
  func.func @transform_1(%arg0: i32) -> (i32, i32) {
    %c0_i32 = arith.constant 0 : i32
    %c0_i32_0 = arith.constant 0 : i32
    %c0_i32_1 = arith.constant 0 : i32
    return %c0_i32, %c0_i32_0 : i32, i32
  }
  func.func @transform_2(%arg0: i32) -> (i32, i32, i32) {
    %c0_i32 = arith.constant 0 : i32
    %c0_i32_0 = arith.constant 0 : i32
    %c0_i32_1 = arith.constant 0 : i32
    return %arg0, %c0_i32, %c0_i32_0 : i32, i32, i32
  }
}

</mosaic_0001>

<llo_original>
// kernel: tpu_custom_call.1
$region0: #{tpu_custom_call.1}
  #allocation0 [shape = 'u32[]', space=smem, size = 0x4, offset = 0x4, fixed_abs, tag = 'smem constant byte address 0x4 - core index']
  #allocation1 [shape = 'u32[72,128]{1,0:T(1,128)}', space=vmem, size = 0x9000, scoped, tag = 'internal scratch']
  %s0 = inlined_call_operand.hbm [shape: f32[2,4,256], index: 0, kind: input, shape index: {}]
  %s1 = inlined_call_operand.hbm [shape: f32[512,256], index: 1, kind: input, shape index: {}]
  %s2 = inlined_call_operand.hbm [shape: f32[2,1,256], index: 2, kind: output, shape index: {}]
  %s3 = sld [smem:[#allocation0]]
  $region26: #{tpu_custom_call.1} parent=0
    _
  %s5 = ssub.s32 1, %s3
  %s6 = scalar_select 0, %s5, %s3
  $region1: #{tpu_custom_call.1} parent=0
    #allocation2 [shape = 'u8[8192]{0}', space=vmem, size = 0x2000, scoped, tag = 'input window, operand 0, single buffered']
    #allocation3 [shape = 's32[1]{0}', space=sflag, size = 0x4, scoped, tag = 'scoped memory for tpu_custom_call.1']
    #allocation4 [shape = 's32[1]{0}', space=sflag, size = 0x4, scoped, tag = 'scoped memory for tpu_custom_call.1']
    #allocation5 [shape = 'u8[524288]{0}', space=vmem, size = 0x80000, scoped, tag = 'input window, operand 1, single buffered']
    #allocation6 [shape = 's32[1]{0}', space=sflag, size = 0x4, scoped, tag = 'scoped memory for tpu_custom_call.1']
    #allocation7 [shape = 'u8[2048]{0}', space=vmem, size = 0x800, scoped, tag = 'output window, operand 0, single buffered']
    %7 = vsyncpa [#allocation3], 0
    %8 = vsyncpa [#allocation6], 0
    %9 = vsyncpa [#allocation4], 0
    // Predicated region
    $region2: #{tpu_custom_call.1} parent=1 // pred_check
      _
    $region3: #{tpu_custom_call.1} parent=1 // pred_check_branch
      %11 = sbr.rel (0) target = $region5
    $region4: #{tpu_custom_call.1} parent=1 // pred_region
      %13 = vsyncadd [#allocation3], 0
      %s14 = sshll.u32 %s0, 4
      %s15 = int_to_ptr.hbm [resolvable:$true] %s14
      %s16 = sshll.u32 [#allocation2], 4
      %s17 = int_to_ptr.vmem [resolvable:$true] %s16
      %22 = dma.hbm_to_vmem [thread:$0]  %s15, 256, %s17, [#allocation3], 128, 128, 8
    $region5: #{tpu_custom_call.1} parent=1 // pred_fallthru
      _
    // Predicated region
    $region6: #{tpu_custom_call.1} parent=1 // pred_check
      _
    $region7: #{tpu_custom_call.1} parent=1 // pred_check_branch
      %24 = sbr.rel (0) target = $region9
    $region8: #{tpu_custom_call.1} parent=1 // pred_region
      %26 = vsyncadd [#allocation6], 0
      %s27 = sshll.u32 %s1, 4
      %s28 = int_to_ptr.hbm [resolvable:$true] %s27
      %s29 = sshll.u32 [#allocation5], 4
      %s30 = int_to_ptr.vmem [resolvable:$true] %s29
      %35 = dma.hbm_to_vmem [thread:$0]  %s28, 16384, %s30, [#allocation6], 256, 256, 16
    $region9: #{tpu_custom_call.1} parent=1 // pred_fallthru
      _
    // Predicated region
    $region10: #{tpu_custom_call.1} parent=1 // pred_check
      _
    $region11: #{tpu_custom_call.1} parent=1 // pred_check_branch
      %37 = sbr.rel (0) target = $region13
    $region12: #{tpu_custom_call.1} parent=1 // pred_region
      %39 = dma.done [#allocation3], 256
    $region13: #{tpu_custom_call.1} parent=1 // pred_fallthru
      _
    // Predicated region
    $region14: #{tpu_custom_call.1} parent=1 // pred_check
      _
    $region15: #{tpu_custom_call.1} parent=1 // pred_check_branch
      %41 = sbr.rel (0) target = $region17
    $region16: #{tpu_custom_call.1} parent=1 // pred_region
      %43 = dma.done [#allocation6], 16384
    $region17: #{tpu_custom_call.1} parent=1 // pred_fallthru
      _
    %v44 = vld [vmem:[#allocation2] sm:$0xff]
    %v45 = vld [vmem:[#allocation2 + $0x8] sm:$0xff]
    %48 = vst [vmem:[#allocation1] ss:$2 sm:$0xff] %v44
    %v49 = vld.sshfl [vmem:[#allocation1] sm:$0xff pattern:$0x75316420]
    %v50 = vld.sshfl [vmem:[#allocation1 + $0x8] sm:$0xff pattern:$0x75316420]
    %s51 = scalar_lea.vmem [#allocation1], 16
    %52 = vst [vmem:[%s51] ss:$2 sm:$0xff] %v45
    %v53 = vld.sshfl [vmem:[#allocation1 + $0x10] sm:$0xff pattern:$0x75316420]
    %v54 = vld.sshfl [vmem:[#allocation1 + $0x18] sm:$0xff pattern:$0x75316420]
    %vm59 = vcmask 1043456
    %v60 = vsel %vm59, %v49, 0.0
    %v61 = vrot.slane %v60, 4
    %v62 = vadd.f32 %v60, %v61
    %v63 = vrot.slane %v62, 2
    %v64 = vadd.f32 %v62, %v63
    %v65 = vrot.slane %v64, 1
    %v66 = vadd.f32 %v64, %v65
    %v67 = vsel %vm59, %v50, 0.0
    %v68 = vrot.slane %v67, 4
    %v69 = vadd.f32 %v67, %v68
    %v70 = vrot.slane %v69, 2
    %v71 = vadd.f32 %v69, %v70
    %v72 = vrot.slane %v71, 1
    %v73 = vadd.f32 %v71, %v72
    %v74 = vsel %vm59, %v53, 0.0
    %v75 = vrot.slane %v74, 4
    %v76 = vadd.f32 %v74, %v75
    %v77 = vrot.slane %v76, 2
    %v78 = vadd.f32 %v76, %v77
    %v79 = vrot.slane %v78, 1
    %v80 = vadd.f32 %v78, %v79
    %v81 = vsel %vm59, %v54, 0.0
    %v82 = vrot.slane %v81, 4
    %v83 = vadd.f32 %v81, %v82
    %v84 = vrot.slane %v83, 2
    %v85 = vadd.f32 %v83, %v84
    %v86 = vrot.slane %v85, 1
    %v87 = vadd.f32 %v85, %v86
    %88 = vst [vmem:[#allocation1] ss:$2 sm:$0xff] %v44
    %v89 = vld.sshfl [vmem:[#allocation1] sm:$0xff pattern:$0x75316420]
    %v90 = vld.sshfl [vmem:[#allocation1 + $0x8] sm:$0xff pattern:$0x75316420]
    %s91 = scalar_lea.vmem [#allocation1], 16
    %92 = vst [vmem:[%s91] ss:$2 sm:$0xff] %v45
    %v93 = vld.sshfl [vmem:[#allocation1 + $0x10] sm:$0xff pattern:$0x75316420]
    %v94 = vld.sshfl [vmem:[#allocation1 + $0x18] sm:$0xff pattern:$0x75316420]
    %v99 = vsel %vm59, %v89, -inf
    %v100 = vrot.slane %v99, 4
    %v101 = vmax.f32 %v99, %v100
    %v102 = vrot.slane %v101, 2
    %v103 = vmax.f32 %v101, %v102
    %v104 = vrot.slane %v103, 1
    %v105 = vmax.f32 %v103, %v104
    %v106 = vsel %vm59, %v90, -inf
    %v107 = vrot.slane %v106, 4
    %v108 = vmax.f32 %v106, %v107
    %v109 = vrot.slane %v108, 2
    %v110 = vmax.f32 %v108, %v109
    %v111 = vrot.slane %v110, 1
    %v112 = vmax.f32 %v110, %v111
    %v113 = vsel %vm59, %v93, -inf
    %v114 = vrot.slane %v113, 4
    %v115 = vmax.f32 %v113, %v114
    %v116 = vrot.slane %v115, 2
    %v117 = vmax.f32 %v115, %v116
    %v118 = vrot.slane %v117, 1
    %v119 = vmax.f32 %v117, %v118
    %v120 = vsel %vm59, %v94, -inf
    %v121 = vrot.slane %v120, 4
    %v122 = vmax.f32 %v120, %v121
    %v123 = vrot.slane %v122, 2
    %v124 = vmax.f32 %v122, %v123
    %v125 = vrot.slane %v124, 1
    %v126 = vmax.f32 %v124, %v125
    %vm131 = vcmask 1041409
    %v132 = vsel %vm131, %v80, %v66
    %v133 = vsel %vm131, %v87, %v73
    %v140 = vsel %vm131, %v119, %v105
    %v141 = vsel %vm131, %v126, %v112
    %v144 = vld [vmem:[#allocation5] sm:$0xff]
    %v145 = vld [vmem:[#allocation5 + $0x8] sm:$0xff]
    %v146 = vld [vmem:[#allocation5 + $0x10] sm:$0xff]
    %v147 = vld [vmem:[#allocation5 + $0x18] sm:$0xff]
    %v148 = vld [vmem:[#allocation5 + $0x20] sm:$0xff]
    %v149 = vld [vmem:[#allocation5 + $0x28] sm:$0xff]
    %v150 = vld [vmem:[#allocation5 + $0x30] sm:$0xff]
    %v151 = vld [vmem:[#allocation5 + $0x38] sm:$0xff]
    %v152 = vld [vmem:[#allocation5 + $0x40] sm:$0xff]
    %v153 = vld [vmem:[#allocation5 + $0x48] sm:$0xff]
    %v154 = vld [vmem:[#allocation5 + $0x50] sm:$0xff]
    %v155 = vld [vmem:[#allocation5 + $0x58] sm:$0xff]
    %v156 = vld [vmem:[#allocation5 + $0x60] sm:$0xff]
    %v157 = vld [vmem:[#allocation5 + $0x68] sm:$0xff]
    %v158 = vld [vmem:[#allocation5 + $0x70] sm:$0xff]
    %v159 = vld [vmem:[#allocation5 + $0x78] sm:$0xff]
    %v160 = vld [vmem:[#allocation5 + $0x80] sm:$0xff]
    %v161 = vld [vmem:[#allocation5 + $0x88] sm:$0xff]
    %v162 = vld [vmem:[#allocation5 + $0x90] sm:$0xff]
    %v163 = vld [vmem:[#allocation5 + $0x98] sm:$0xff]
    %v164 = vld [vmem:[#allocation5 + $0xa0] sm:$0xff]
    %v165 = vld [vmem:[#allocation5 + $0xa8] sm:$0xff]
    %v166 = vld [vmem:[#allocation5 + $0xb0] sm:$0xff]
    %v167 = vld [vmem:[#allocation5 + $0xb8] sm:$0xff]
    %v168 = vld [vmem:[#allocation5 + $0xc0] sm:$0xff]
    %v169 = vld [vmem:[#allocation5 + $0xc8] sm:$0xff]
    %v170 = vld [vmem:[#allocation5 + $0xd0] sm:$0xff]
    %v171 = vld [vmem:[#allocation5 + $0xd8] sm:$0xff]
    %v172 = vld [vmem:[#allocation5 + $0xe0] sm:$0xff]
    %v173 = vld [vmem:[#allocation5 + $0xe8] sm:$0xff]
    %v174 = vld [vmem:[#allocation5 + $0xf0] sm:$0xff]
    %v175 = vld [vmem:[#allocation5 + $0xf8] sm:$0xff]
    %v176 = vld [vmem:[#allocation5 + $0x100] sm:$0xff]
    %v177 = vld [vmem:[#allocation5 + $0x108] sm:$0xff]
    %v178 = vld [vmem:[#allocation5 + $0x110] sm:$0xff]
    %v179 = vld [vmem:[#allocation5 + $0x118] sm:$0xff]
    %v180 = vld [vmem:[#allocation5 + $0x120] sm:$0xff]
    %v181 = vld [vmem:[#allocation5 + $0x128] sm:$0xff]
    %v182 = vld [vmem:[#allocation5 + $0x130] sm:$0xff]
    %v183 = vld [vmem:[#allocation5 + $0x138] sm:$0xff]
    %v184 = vld [vmem:[#allocation5 + $0x140] sm:$0xff]
    %v185 = vld [vmem:[#allocation5 + $0x148] sm:$0xff]
    %v186 = vld [vmem:[#allocation5 + $0x150] sm:$0xff]
    %v187 = vld [vmem:[#allocation5 + $0x158] sm:$0xff]
    %v188 = vld [vmem:[#allocation5 + $0x160] sm:$0xff]
    %v189 = vld [vmem:[#allocation5 + $0x168] sm:$0xff]
    %v190 = vld [vmem:[#allocation5 + $0x170] sm:$0xff]
    %v191 = vld [vmem:[#allocation5 + $0x178] sm:$0xff]
    %v192 = vld [vmem:[#allocation5 + $0x180] sm:$0xff]
    %v193 = vld [vmem:[#allocation5 + $0x188] sm:$0xff]
    %v194 = vld [vmem:[#allocation5 + $0x190] sm:$0xff]
    %v195 = vld [vmem:[#allocation5 + $0x198] sm:$0xff]
    %v196 = vld [vmem:[#allocation5 + $0x1a0] sm:$0xff]
    %v197 = vld [vmem:[#allocation5 + $0x1a8] sm:$0xff]
    %v198 = vld [vmem:[#allocation5 + $0x1b0] sm:$0xff]
    %v199 = vld [vmem:[#allocation5 + $0x1b8] sm:$0xff]
    %v200 = vld [vmem:[#allocation5 + $0x1c0] sm:$0xff]
    %v201 = vld [vmem:[#allocation5 + $0x1c8] sm:$0xff]
    %v202 = vld [vmem:[#allocation5 + $0x1d0] sm:$0xff]
    %v203 = vld [vmem:[#allocation5 + $0x1d8] sm:$0xff]
    %v204 = vld [vmem:[#allocation5 + $0x1e0] sm:$0xff]
    %v205 = vld [vmem:[#allocation5 + $0x1e8] sm:$0xff]
    %v206 = vld [vmem:[#allocation5 + $0x1f0] sm:$0xff]
    %v207 = vld [vmem:[#allocation5 + $0x1f8] sm:$0xff]
    %v208 = vld [vmem:[#allocation5 + $0x200] sm:$0xff]
    %v209 = vld [vmem:[#allocation5 + $0x208] sm:$0xff]
    %v210 = vld [vmem:[#allocation5 + $0x210] sm:$0xff]
    %v211 = vld [vmem:[#allocation5 + $0x218] sm:$0xff]
    %v212 = vld [vmem:[#allocation5 + $0x220] sm:$0xff]
    %v213 = vld [vmem:[#allocation5 + $0x228] sm:$0xff]
    %v214 = vld [vmem:[#allocation5 + $0x230] sm:$0xff]
    %v215 = vld [vmem:[#allocation5 + $0x238] sm:$0xff]
    %v216 = vld [vmem:[#allocation5 + $0x240] sm:$0xff]
    %v217 = vld [vmem:[#allocation5 + $0x248] sm:$0xff]
    %v218 = vld [vmem:[#allocation5 + $0x250] sm:$0xff]
    %v219 = vld [vmem:[#allocation5 + $0x258] sm:$0xff]
    %v220 = vld [vmem:[#allocation5 + $0x260] sm:$0xff]
    %v221 = vld [vmem:[#allocation5 + $0x268] sm:$0xff]
    %v222 = vld [vmem:[#allocation5 + $0x270] sm:$0xff]
    %v223 = vld [vmem:[#allocation5 + $0x278] sm:$0xff]
    %v224 = vld [vmem:[#allocation5 + $0x280] sm:$0xff]
    %v225 = vld [vmem:[#allocation5 + $0x288] sm:$0xff]
    %v226 = vld [vmem:[#allocation5 + $0x290] sm:$0xff]
    %v227 = vld [vmem:[#allocation5 + $0x298] sm:$0xff]
    %v228 = vld [vmem:[#allocation5 + $0x2a0] sm:$0xff]
    %v229 = vld [vmem:[#allocation5 + $0x2a8] sm:$0xff]
    %v230 = vld [vmem:[#allocation5 + $0x2b0] sm:$0xff]
    %v231 = vld [vmem:[#allocation5 + $0x2b8] sm:$0xff]
    %v232 = vld [vmem:[#allocation5 + $0x2c0] sm:$0xff]
    %v233 = vld [vmem:[#allocation5 + $0x2c8] sm:$0xff]
    %v234 = vld [vmem:[#allocation5 + $0x2d0] sm:$0xff]
    %v235 = vld [vmem:[#allocation5 + $0x2d8] sm:$0xff]
    %v236 = vld [vmem:[#allocation5 + $0x2e0] sm:$0xff]
    %v237 = vld [vmem:[#allocation5 + $0x2e8] sm:$0xff]
    %v238 = vld [vmem:[#allocation5 + $0x2f0] sm:$0xff]
    %v239 = vld [vmem:[#allocation5 + $0x2f8] sm:$0xff]
    %v240 = vld [vmem:[#allocation5 + $0x300] sm:$0xff]
    %v241 = vld [vmem:[#allocation5 + $0x308] sm:$0xff]
    %v242 = vld [vmem:[#allocation5 + $0x310] sm:$0xff]
    %v243 = vld [vmem:[#allocation5 + $0x318] sm:$0xff]
    %v244 = vld [vmem:[#allocation5 + $0x320] sm:$0xff]
    %v245 = vld [vmem:[#allocation5 + $0x328] sm:$0xff]
    %v246 = vld [vmem:[#allocation5 + $0x330] sm:$0xff]
    %v247 = vld [vmem:[#allocation5 + $0x338] sm:$0xff]
    %v248 = vld [vmem:[#allocation5 + $0x340] sm:$0xff]
    %v249 = vld [vmem:[#allocation5 + $0x348] sm:$0xff]
    %v250 = vld [vmem:[#allocation5 + $0x350] sm:$0xff]
    %v251 = vld [vmem:[#allocation5 + $0x358] sm:$0xff]
    %v252 = vld [vmem:[#allocation5 + $0x360] sm:$0xff]
    %v253 = vld [vmem:[#allocation5 + $0x368] sm:$0xff]
    %v254 = vld [vmem:[#allocation5 + $0x370] sm:$0xff]
    %v255 = vld [vmem:[#allocation5 + $0x378] sm:$0xff]
    %v256 = vld [vmem:[#allocation5 + $0x380] sm:$0xff]
    %v257 = vld [vmem:[#allocation5 + $0x388] sm:$0xff]
    %v258 = vld [vmem:[#allocation5 + $0x390] sm:$0xff]
    %v259 = vld [vmem:[#allocation5 + $0x398] sm:$0xff]
    %v260 = vld [vmem:[#allocation5 + $0x3a0] sm:$0xff]
    %v261 = vld [vmem:[#allocation5 + $0x3a8] sm:$0xff]
    %v262 = vld [vmem:[#allocation5 + $0x3b0] sm:$0xff]
    %v263 = vld [vmem:[#allocation5 + $0x3b8] sm:$0xff]
    %v264 = vld [vmem:[#allocation5 + $0x3c0] sm:$0xff]
    %v265 = vld [vmem:[#allocation5 + $0x3c8] sm:$0xff]
    %v266 = vld [vmem:[#allocation5 + $0x3d0] sm:$0xff]
    %v267 = vld [vmem:[#allocation5 + $0x3d8] sm:$0xff]
    %v268 = vld [vmem:[#allocation5 + $0x3e0] sm:$0xff]
    %v269 = vld [vmem:[#allocation5 + $0x3e8] sm:$0xff]
    %v270 = vld [vmem:[#allocation5 + $0x3f0] sm:$0xff]
    %v271 = vld [vmem:[#allocation5 + $0x3f8] sm:$0xff]
    %v272 = vand.u32 %v174, 4294901760
    %273 = vmatpush.msra.mxu0 %v272
    %v274 = vand.u32 %v172, 4294901760
    %275 = vmatpush.msra.mxu0 %v274
    %v276 = vand.u32 %v170, 4294901760
    %277 = vmatpush.msra.mxu0 %v276
    %v278 = vand.u32 %v168, 4294901760
    %279 = vmatpush.msra.mxu0 %v278
    %v280 = vand.u32 %v166, 4294901760
    %281 = vmatpush.msra.mxu0 %v280
    %v282 = vand.u32 %v164, 4294901760
    %283 = vmatpush.msra.mxu0 %v282
    %v284 = vand.u32 %v162, 4294901760
    %285 = vmatpush.msra.mxu0 %v284
    %v286 = vand.u32 %v160, 4294901760
    %287 = vmatpush.msra.mxu0 %v286
    %v288 = vand.u32 %v158, 4294901760
    %289 = vmatpush.msra.mxu0 %v288
    %v290 = vand.u32 %v156, 4294901760
    %291 = vmatpush.msra.mxu0 %v290
    %v292 = vand.u32 %v154, 4294901760
    %293 = vmatpush.msra.mxu0 %v292
    %v294 = vand.u32 %v152, 4294901760
    %295 = vmatpush.msra.mxu0 %v294
    %v296 = vand.u32 %v150, 4294901760
    %297 = vmatpush.msra.mxu0 %v296
    %v298 = vand.u32 %v148, 4294901760
    %299 = vmatpush.msra.mxu0 %v298
    %v300 = vand.u32 %v146, 4294901760
    %301 = vmatpush.msra.mxu0 %v300
    %v302 = vand.u32 %v144, 4294901760
    %303 = vmatpush.msra.mxu0 %v302
    %v304 = vand.u32 %v132, 4294901760
    %v305 = vsub.f32 %v132, %v304
    %v306 = vand.u32 %v305, 4294901760
    %v307 = vsub.f32 %v305, %v306
    %v308 = vand.u32 %v307, 4294901760
    %309 = vmatmul.f32.gmra.mxu0 %v308
    %v310 = vpop.f32.mrf.mxu0
    %v311 = vadd.f32 0.0, %v310
    %312 = vdwg.mxu0
    %v313 = vand.u32 %v174, 4294901760
    %v314 = vsub.f32 %v174, %v313
    %v315 = vand.u32 %v314, 4294901760
    %v316 = vsub.f32 %v314, %v315
    %v317 = vand.u32 %v316, 4294901760
    %318 = vmatpush.msra.mxu0 %v317
    %v319 = vand.u32 %v172, 4294901760
    %v320 = vsub.f32 %v172, %v319
    %v321 = vand.u32 %v320, 4294901760
    %v322 = vsub.f32 %v320, %v321
    %v323 = vand.u32 %v322, 4294901760
    %324 = vmatpush.msra.mxu0 %v323
    %v325 = vand.u32 %v170, 4294901760
    %v326 = vsub.f32 %v170, %v325
    %v327 = vand.u32 %v326, 4294901760
    %v328 = vsub.f32 %v326, %v327
    %v329 = vand.u32 %v328, 4294901760
    %330 = vmatpush.msra.mxu0 %v329
    %v331 = vand.u32 %v168, 4294901760
    %v332 = vsub.f32 %v168, %v331
    %v333 = vand.u32 %v332, 4294901760
    %v334 = vsub.f32 %v332, %v333
    %v335 = vand.u32 %v334, 4294901760
    %336 = vmatpush.msra.mxu0 %v335
    %v337 = vand.u32 %v166, 4294901760
    %v338 = vsub.f32 %v166, %v337
    %v339 = vand.u32 %v338, 4294901760
    %v340 = vsub.f32 %v338, %v339
    %v341 = vand.u32 %v340, 4294901760
    %342 = vmatpush.msra.mxu0 %v341
    %v343 = vand.u32 %v164, 4294901760
    %v344 = vsub.f32 %v164, %v343
    %v345 = vand.u32 %v344, 4294901760
    %v346 = vsub.f32 %v344, %v345
    %v347 = vand.u32 %v346, 4294901760
    %348 = vmatpush.msra.mxu0 %v347
    %v349 = vand.u32 %v162, 4294901760
    %v350 = vsub.f32 %v162, %v349
    %v351 = vand.u32 %v350, 4294901760
    %v352 = vsub.f32 %v350, %v351
    %v353 = vand.u32 %v352, 4294901760
    %354 = vmatpush.msra.mxu0 %v353
    %v355 = vand.u32 %v160, 4294901760
    %v356 = vsub.f32 %v160, %v355
    %v357 = vand.u32 %v356, 4294901760
    %v358 = vsub.f32 %v356, %v357
    %v359 = vand.u32 %v358, 4294901760
    %360 = vmatpush.msra.mxu0 %v359
    %v361 = vand.u32 %v158, 4294901760
    %v362 = vsub.f32 %v158, %v361
    %v363 = vand.u32 %v362, 4294901760
    %v364 = vsub.f32 %v362, %v363
    %v365 = vand.u32 %v364, 4294901760
    %366 = vmatpush.msra.mxu0 %v365
    %v367 = vand.u32 %v156, 4294901760
    %v368 = vsub.f32 %v156, %v367
    %v369 = vand.u32 %v368, 4294901760
    %v370 = vsub.f32 %v368, %v369
    %v371 = vand.u32 %v370, 4294901760
    %372 = vmatpush.msra.mxu0 %v371
    %v373 = vand.u32 %v154, 4294901760
    %v374 = vsub.f32 %v154, %v373
    %v375 = vand.u32 %v374, 4294901760
    %v376 = vsub.f32 %v374, %v375
    %v377 = vand.u32 %v376, 4294901760
    %378 = vmatpush.msra.mxu0 %v377
    %v379 = vand.u32 %v152, 4294901760
    %v380 = vsub.f32 %v152, %v379
    %v381 = vand.u32 %v380, 4294901760
    %v382 = vsub.f32 %v380, %v381
    %v383 = vand.u32 %v382, 4294901760
    %384 = vmatpush.msra.mxu0 %v383
    %v385 = vand.u32 %v150, 4294901760
    %v386 = vsub.f32 %v150, %v385
    %v387 = vand.u32 %v386, 4294901760
    %v388 = vsub.f32 %v386, %v387
    %v389 = vand.u32 %v388, 4294901760
    %390 = vmatpush.msra.mxu0 %v389
    %v391 = vand.u32 %v148, 4294901760
    %v392 = vsub.f32 %v148, %v391
    %v393 = vand.u32 %v392, 4294901760
    %v394 = vsub.f32 %v392, %v393
    %v395 = vand.u32 %v394, 4294901760
    %396 = vmatpush.msra.mxu0 %v395
    %v397 = vand.u32 %v146, 4294901760
    %v398 = vsub.f32 %v146, %v397
    %v399 = vand.u32 %v398, 4294901760
    %v400 = vsub.f32 %v398, %v399
    %v401 = vand.u32 %v400, 4294901760
    %402 = vmatpush.msra.mxu0 %v401
    %v403 = vand.u32 %v144, 4294901760
    %v404 = vsub.f32 %v144, %v403
    %v405 = vand.u32 %v404, 4294901760
    %v406 = vsub.f32 %v404, %v405
    %v407 = vand.u32 %v406, 4294901760
    %408 = vmatpush.msra.mxu0 %v407
    %v409 = vand.u32 %v132, 4294901760
    %410 = vmatmul.f32.gmra.mxu0 %v409
    %v411 = vpop.f32.mrf.mxu0
    %v412 = vadd.f32 %v311, %v411
    %413 = vdwg.mxu0
    %v414 = vand.u32 %v174, 4294901760
    %v415 = vsub.f32 %v174, %v414
    %416 = vmatpush.msra.mxu0 %v415
    %v417 = vand.u32 %v172, 4294901760
    %v418 = vsub.f32 %v172, %v417
    %419 = vmatpush.msra.mxu0 %v418
    %v420 = vand.u32 %v170, 4294901760
    %v421 = vsub.f32 %v170, %v420
    %422 = vmatpush.msra.mxu0 %v421
    %v423 = vand.u32 %v168, 4294901760
    %v424 = vsub.f32 %v168, %v423
    %425 = vmatpush.msra.mxu0 %v424
    %v426 = vand.u32 %v166, 4294901760
    %v427 = vsub.f32 %v166, %v426
    %428 = vmatpush.msra.mxu0 %v427
    %v429 = vand.u32 %v164, 4294901760
    %v430 = vsub.f32 %v164, %v429
    %431 = vmatpush.msra.mxu0 %v430
    %v432 = vand.u32 %v162, 4294901760
    %v433 = vsub.f32 %v162, %v432
    %434 = vmatpush.msra.mxu0 %v433
    %v435 = vand.u32 %v160, 4294901760
    %v436 = vsub.f32 %v160, %v435
    %437 = vmatpush.msra.mxu0 %v436
    %v438 = vand.u32 %v158, 4294901760
    %v439 = vsub.f32 %v158, %v438
    %440 = vmatpush.msra.mxu0 %v439
    %v441 = vand.u32 %v156, 4294901760
    %v442 = vsub.f32 %v156, %v441
    %443 = vmatpush.msra.mxu0 %v442
    %v444 = vand.u32 %v154, 4294901760
    %v445 = vsub.f32 %v154, %v444
    %446 = vmatpush.msra.mxu0 %v445
    %v447 = vand.u32 %v152, 4294901760
    %v448 = vsub.f32 %v152, %v447
    %449 = vmatpush.msra.mxu0 %v448
    %v450 = vand.u32 %v150, 4294901760
    %v451 = vsub.f32 %v150, %v450
    %452 = vmatpush.msra.mxu0 %v451
    %v453 = vand.u32 %v148, 4294901760
    %v454 = vsub.f32 %v148, %v453
    %455 = vmatpush.msra.mxu0 %v454
    %v456 = vand.u32 %v146, 4294901760
    %v457 = vsub.f32 %v146, %v456
    %458 = vmatpush.msra.mxu0 %v457
    %v459 = vand.u32 %v144, 4294901760
    %v460 = vsub.f32 %v144, %v459
    %461 = vmatpush.msra.mxu0 %v460
    %v462 = vand.u32 %v132, 4294901760
    %v463 = vsub.f32 %v132, %v462
    %464 = vmatmul.f32.gmra.mxu0 %v463
    %v465 = vpop.f32.mrf.mxu0
    %v466 = vadd.f32 %v412, %v465
    %467 = vdwg.mxu0
    %v468 = vand.u32 %v174, 4294901760
    %469 = vmatpush.msra.mxu0 %v468
    %v470 = vand.u32 %v172, 4294901760
    %471 = vmatpush.msra.mxu0 %v470
    %v472 = vand.u32 %v170, 4294901760
    %473 = vmatpush.msra.mxu0 %v472
    %v474 = vand.u32 %v168, 4294901760
    %475 = vmatpush.msra.mxu0 %v474
    %v476 = vand.u32 %v166, 4294901760
    %477 = vmatpush.msra.mxu0 %v476
    %v478 = vand.u32 %v164, 4294901760
    %479 = vmatpush.msra.mxu0 %v478
    %v480 = vand.u32 %v162, 4294901760
    %481 = vmatpush.msra.mxu0 %v480
    %v482 = vand.u32 %v160, 4294901760
    %483 = vmatpush.msra.mxu0 %v482
    %v484 = vand.u32 %v158, 4294901760
    %485 = vmatpush.msra.mxu0 %v484
    %v486 = vand.u32 %v156, 4294901760
    %487 = vmatpush.msra.mxu0 %v486
    %v488 = vand.u32 %v154, 4294901760
    %489 = vmatpush.msra.mxu0 %v488
    %v490 = vand.u32 %v152, 4294901760
    %491 = vmatpush.msra.mxu0 %v490
    %v492 = vand.u32 %v150, 4294901760
    %493 = vmatpush.msra.mxu0 %v492
    %v494 = vand.u32 %v148, 4294901760
    %495 = vmatpush.msra.mxu0 %v494
    %v496 = vand.u32 %v146, 4294901760
    %497 = vmatpush.msra.mxu0 %v496
    %v498 = vand.u32 %v144, 4294901760
    %499 = vmatpush.msra.mxu0 %v498
    %v500 = vand.u32 %v132, 4294901760
    %v501 = vsub.f32 %v132, %v500
    %v502 = vand.u32 %v501, 4294901760
    %503 = vmatmul.f32.gmra.mxu0 %v502
    %v504 = vpop.f32.mrf.mxu0
    %v505 = vadd.f32 %v466, %v504
    %506 = vdwg.mxu0
    %v507 = vand.u32 %v174, 4294901760
    %v508 = vsub.f32 %v174, %v507
    %v509 = vand.u32 %v508, 4294901760
    %510 = vmatpush.msra.mxu0 %v509
    %v511 = vand.u32 %v172, 4294901760
    %v512 = vsub.f32 %v172, %v511
    %v513 = vand.u32 %v512, 4294901760
    %514 = vmatpush.msra.mxu0 %v513
    %v515 = vand.u32 %v170, 4294901760
    %v516 = vsub.f32 %v170, %v515
    %v517 = vand.u32 %v516, 4294901760
    %518 = vmatpush.msra.mxu0 %v517
    %v519 = vand.u32 %v168, 4294901760
    %v520 = vsub.f32 %v168, %v519
    %v521 = vand.u32 %v520, 4294901760
    %522 = vmatpush.msra.mxu0 %v521
    %v523 = vand.u32 %v166, 4294901760
    %v524 = vsub.f32 %v166, %v523
    %v525 = vand.u32 %v524, 4294901760
    %526 = vmatpush.msra.mxu0 %v525
    %v527 = vand.u32 %v164, 4294901760
    %v528 = vsub.f32 %v164, %v527
    %v529 = vand.u32 %v528, 4294901760
    %530 = vmatpush.msra.mxu0 %v529
    %v531 = vand.u32 %v162, 4294901760
    %v532 = vsub.f32 %v162, %v531
    %v533 = vand.u32 %v532, 4294901760
    %534 = vmatpush.msra.mxu0 %v533
    %v535 = vand.u32 %v160, 4294901760
    %v536 = vsub.f32 %v160, %v535
    %v537 = vand.u32 %v536, 4294901760
    %538 = vmatpush.msra.mxu0 %v537
    %v539 = vand.u32 %v158, 4294901760
    %v540 = vsub.f32 %v158, %v539
    %v541 = vand.u32 %v540, 4294901760
    %542 = vmatpush.msra.mxu0 %v541
    %v543 = vand.u32 %v156, 4294901760
    %v544 = vsub.f32 %v156, %v543
    %v545 = vand.u32 %v544, 4294901760
    %546 = vmatpush.msra.mxu0 %v545
    %v547 = vand.u32 %v154, 4294901760
    %v548 = vsub.f32 %v154, %v547
    %v549 = vand.u32 %v548, 4294901760
    %550 = vmatpush.msra.mxu0 %v549
    %v551 = vand.u32 %v152, 4294901760
    %v552 = vsub.f32 %v152, %v551
    %v553 = vand.u32 %v552, 4294901760
    %554 = vmatpush.msra.mxu0 %v553
    %v555 = vand.u32 %v150, 4294901760
    %v556 = vsub.f32 %v150, %v555
    %v557 = vand.u32 %v556, 4294901760
    %558 = vmatpush.msra.mxu0 %v557
    %v559 = vand.u32 %v148, 4294901760
    %v560 = vsub.f32 %v148, %v559
    %v561 = vand.u32 %v560, 4294901760
    %562 = vmatpush.msra.mxu0 %v561
    %v563 = vand.u32 %v146, 4294901760
    %v564 = vsub.f32 %v146, %v563
    %v565 = vand.u32 %v564, 4294901760
    %566 = vmatpush.msra.mxu0 %v565
    %v567 = vand.u32 %v144, 4294901760
    %v568 = vsub.f32 %v144, %v567
    %v569 = vand.u32 %v568, 4294901760
    %570 = vmatpush.msra.mxu0 %v569
    %v571 = vand.u32 %v132, 4294901760
    %572 = vmatmul.f32.gmra.mxu0 %v571
    %v573 = vpop.f32.mrf.mxu0
    %v574 = vadd.f32 %v505, %v573
    %575 = vdwg.mxu0
    %v576 = vand.u32 %v174, 4294901760
    %577 = vmatpush.msra.mxu0 %v576
    %v578 = vand.u32 %v172, 4294901760
    %579 = vmatpush.msra.mxu0 %v578
    %v580 = vand.u32 %v170, 4294901760
    %581 = vmatpush.msra.mxu0 %v580
    %v582 = vand.u32 %v168, 4294901760
    %583 = vmatpush.msra.mxu0 %v582
    %v584 = vand.u32 %v166, 4294901760
    %585 = vmatpush.msra.mxu0 %v584
    %v586 = vand.u32 %v164, 4294901760
    %587 = vmatpush.msra.mxu0 %v586
    %v588 = vand.u32 %v162, 4294901760
    %589 = vmatpush.msra.mxu0 %v588
    %v590 = vand.u32 %v160, 4294901760
    %591 = vmatpush.msra.mxu0 %v590
    %v592 = vand.u32 %v158, 4294901760
    %593 = vmatpush.msra.mxu0 %v592
    %v594 = vand.u32 %v156, 4294901760
    %595 = vmatpush.msra.mxu0 %v594
    %v596 = vand.u32 %v154, 4294901760
    %597 = vmatpush.msra.mxu0 %v596
    %v598 = vand.u32 %v152, 4294901760
    %599 = vmatpush.msra.mxu0 %v598
    %v600 = vand.u32 %v150, 4294901760
    %601 = vmatpush.msra.mxu0 %v600
    %v602 = vand.u32 %v148, 4294901760
    %603 = vmatpush.msra.mxu0 %v602
    %v604 = vand.u32 %v146, 4294901760
    %605 = vmatpush.msra.mxu0 %v604
    %v606 = vand.u32 %v144, 4294901760
    %607 = vmatpush.msra.mxu0 %v606
    %v608 = vand.u32 %v132, 4294901760
    %609 = vmatmul.f32.gmra.mxu0 %v608
    %v610 = vpop.f32.mrf.mxu0
    %v611 = vadd.f32 %v574, %v610
    %612 = vdwg.mxu0
    %v613 = vand.u32 %v206, 4294901760
    %614 = vmatpush.msra.mxu0 %v613
    %v615 = vand.u32 %v204, 4294901760
    %616 = vmatpush.msra.mxu0 %v615
    %v617 = vand.u32 %v202, 4294901760
    %618 = vmatpush.msra.mxu0 %v617
    %v619 = vand.u32 %v200, 4294901760
    %620 = vmatpush.msra.mxu0 %v619
    %v621 = vand.u32 %v198, 4294901760
    %622 = vmatpush.msra.mxu0 %v621
    %v623 = vand.u32 %v196, 4294901760
    %624 = vmatpush.msra.mxu0 %v623
    %v625 = vand.u32 %v194, 4294901760
    %626 = vmatpush.msra.mxu0 %v625
    %v627 = vand.u32 %v192, 4294901760
    %628 = vmatpush.msra.mxu0 %v627
    %v629 = vand.u32 %v190, 4294901760
    %630 = vmatpush.msra.mxu0 %v629
    %v631 = vand.u32 %v188, 4294901760
    %632 = vmatpush.msra.mxu0 %v631
    %v633 = vand.u32 %v186, 4294901760
    %634 = vmatpush.msra.mxu0 %v633
    %v635 = vand.u32 %v184, 4294901760
    %636 = vmatpush.msra.mxu0 %v635
    %v637 = vand.u32 %v182, 4294901760
    %638 = vmatpush.msra.mxu0 %v637
    %v639 = vand.u32 %v180, 4294901760
    %640 = vmatpush.msra.mxu0 %v639
    %v641 = vand.u32 %v178, 4294901760
    %642 = vmatpush.msra.mxu0 %v641
    %v643 = vand.u32 %v176, 4294901760
    %644 = vmatpush.msra.mxu0 %v643
    %v645 = vand.u32 %v133, 4294901760
    %v646 = vsub.f32 %v133, %v645
    %v647 = vand.u32 %v646, 4294901760
    %v648 = vsub.f32 %v646, %v647
    %v649 = vand.u32 %v648, 4294901760
    %650 = vmatmul.f32.gmra.mxu0 %v649
    %v651 = vpop.f32.mrf.mxu0
    %v652 = vadd.f32 %v611, %v651
    %653 = vdwg.mxu0
    %v654 = vand.u32 %v206, 4294901760
    %v655 = vsub.f32 %v206, %v654
    %v656 = vand.u32 %v655, 4294901760
    %v657 = vsub.f32 %v655, %v656
    %v658 = vand.u32 %v657, 4294901760
    %659 = vmatpush.msra.mxu0 %v658
    %v660 = vand.u32 %v204, 4294901760
    %v661 = vsub.f32 %v204, %v660
    %v662 = vand.u32 %v661, 4294901760
    %v663 = vsub.f32 %v661, %v662
    %v664 = vand.u32 %v663, 4294901760
    %665 = vmatpush.msra.mxu0 %v664
    %v666 = vand.u32 %v202, 4294901760
    %v667 = vsub.f32 %v202, %v666
    %v668 = vand.u32 %v667, 4294901760
    %v669 = vsub.f32 %v667, %v668
    %v670 = vand.u32 %v669, 4294901760
    %671 = vmatpush.msra.mxu0 %v670
    %v672 = vand.u32 %v200, 4294901760
    %v673 = vsub.f32 %v200, %v672
    %v674 = vand.u32 %v673, 4294901760
    %v675 = vsub.f32 %v673, %v674
    %v676 = vand.u32 %v675, 4294901760
    %677 = vmatpush.msra.mxu0 %v676
    %v678 = vand.u32 %v198, 4294901760
    %v679 = vsub.f32 %v198, %v678
    %v680 = vand.u32 %v679, 4294901760
    %v681 = vsub.f32 %v679, %v680
    %v682 = vand.u32 %v681, 4294901760
    %683 = vmatpush.msra.mxu0 %v682
    %v684 = vand.u32 %v196, 4294901760
    %v685 = vsub.f32 %v196, %v684
    %v686 = vand.u32 %v685, 4294901760
    %v687 = vsub.f32 %v685, %v686
    %v688 = vand.u32 %v687, 4294901760
    %689 = vmatpush.msra.mxu0 %v688
    %v690 = vand.u32 %v194, 4294901760
    %v691 = vsub.f32 %v194, %v690
    %v692 = vand.u32 %v691, 4294901760
    %v693 = vsub.f32 %v691, %v692
    %v694 = vand.u32 %v693, 4294901760
    %695 = vmatpush.msra.mxu0 %v694
    %v696 = vand.u32 %v192, 4294901760
    %v697 = vsub.f32 %v192, %v696
    %v698 = vand.u32 %v697, 4294901760
    %v699 = vsub.f32 %v697, %v698
    %v700 = vand.u32 %v699, 4294901760
    %701 = vmatpush.msra.mxu0 %v700
    %v702 = vand.u32 %v190, 4294901760
    %v703 = vsub.f32 %v190, %v702
    %v704 = vand.u32 %v703, 4294901760
    %v705 = vsub.f32 %v703, %v704
    %v706 = vand.u32 %v705, 4294901760
    %707 = vmatpush.msra.mxu0 %v706
    %v708 = vand.u32 %v188, 4294901760
    %v709 = vsub.f32 %v188, %v708
    %v710 = vand.u32 %v709, 4294901760
    %v711 = vsub.f32 %v709, %v710
    %v712 = vand.u32 %v711, 4294901760
    %713 = vmatpush.msra.mxu0 %v712
    %v714 = vand.u32 %v186, 4294901760
    %v715 = vsub.f32 %v186, %v714
    %v716 = vand.u32 %v715, 4294901760
    %v717 = vsub.f32 %v715, %v716
    %v718 = vand.u32 %v717, 4294901760
    %719 = vmatpush.msra.mxu0 %v718
    %v720 = vand.u32 %v184, 4294901760
    %v721 = vsub.f32 %v184, %v720
    %v722 = vand.u32 %v721, 4294901760
    %v723 = vsub.f32 %v721, %v722
    %v724 = vand.u32 %v723, 4294901760
    %725 = vmatpush.msra.mxu0 %v724
    %v726 = vand.u32 %v182, 4294901760
    %v727 = vsub.f32 %v182, %v726
    %v728 = vand.u32 %v727, 4294901760
    %v729 = vsub.f32 %v727, %v728
    %v730 = vand.u32 %v729, 4294901760
    %731 = vmatpush.msra.mxu0 %v730
    %v732 = vand.u32 %v180, 4294901760
    %v733 = vsub.f32 %v180, %v732
    %v734 = vand.u32 %v733, 4294901760
    %v735 = vsub.f32 %v733, %v734
    %v736 = vand.u32 %v735, 4294901760
    %737 = vmatpush.msra.mxu0 %v736
    %v738 = vand.u32 %v178, 4294901760
    %v739 = vsub.f32 %v178, %v738
    %v740 = vand.u32 %v739, 4294901760
    %v741 = vsub.f32 %v739, %v740
    %v742 = vand.u32 %v741, 4294901760
    %743 = vmatpush.msra.mxu0 %v742
    %v744 = vand.u32 %v176, 4294901760
    %v745 = vsub.f32 %v176, %v744
    %v746 = vand.u32 %v745, 4294901760
    %v747 = vsub.f32 %v745, %v746
    %v748 = vand.u32 %v747, 4294901760
    %749 = vmatpush.msra.mxu0 %v748
    %v750 = vand.u32 %v133, 4294901760
    %751 = vmatmul.f32.gmra.mxu0 %v750
    %v752 = vpop.f32.mrf.mxu0
    %v753 = vadd.f32 %v652, %v752
    %754 = vdwg.mxu0
    %v755 = vand.u32 %v206, 4294901760
    %v756 = vsub.f32 %v206, %v755
    %757 = vmatpush.msra.mxu0 %v756
    %v758 = vand.u32 %v204, 4294901760
    %v759 = vsub.f32 %v204, %v758
    %760 = vmatpush.msra.mxu0 %v759
    %v761 = vand.u32 %v202, 4294901760
    %v762 = vsub.f32 %v202, %v761
    %763 = vmatpush.msra.mxu0 %v762
    %v764 = vand.u32 %v200, 4294901760
    %v765 = vsub.f32 %v200, %v764
    %766 = vmatpush.msra.mxu0 %v765
    %v767 = vand.u32 %v198, 4294901760
    %v768 = vsub.f32 %v198, %v767
    %769 = vmatpush.msra.mxu0 %v768
    %v770 = vand.u32 %v196, 4294901760
    %v771 = vsub.f32 %v196, %v770
    %772 = vmatpush.msra.mxu0 %v771
    %v773 = vand.u32 %v194, 4294901760
    %v774 = vsub.f32 %v194, %v773
    %775 = vmatpush.msra.mxu0 %v774
    %v776 = vand.u32 %v192, 4294901760
    %v777 = vsub.f32 %v192, %v776
    %778 = vmatpush.msra.mxu0 %v777
    %v779 = vand.u32 %v190, 4294901760
    %v780 = vsub.f32 %v190, %v779
    %781 = vmatpush.msra.mxu0 %v780
    %v782 = vand.u32 %v188, 4294901760
    %v783 = vsub.f32 %v188, %v782
    %784 = vmatpush.msra.mxu0 %v783
    %v785 = vand.u32 %v186, 4294901760
    %v786 = vsub.f32 %v186, %v785
    %787 = vmatpush.msra.mxu0 %v786
    %v788 = vand.u32 %v184, 4294901760
    %v789 = vsub.f32 %v184, %v788
    %790 = vmatpush.msra.mxu0 %v789
    %v791 = vand.u32 %v182, 4294901760
    %v792 = vsub.f32 %v182, %v791
    %793 = vmatpush.msra.mxu0 %v792
    %v794 = vand.u32 %v180, 4294901760
    %v795 = vsub.f32 %v180, %v794
    %796 = vmatpush.msra.mxu0 %v795
    %v797 = vand.u32 %v178, 4294901760
    %v798 = vsub.f32 %v178, %v797
    %799 = vmatpush.msra.mxu0 %v798
    %v800 = vand.u32 %v176, 4294901760
    %v801 = vsub.f32 %v176, %v800
    %802 = vmatpush.msra.mxu0 %v801
    %v803 = vand.u32 %v133, 4294901760
    %v804 = vsub.f32 %v133, %v803
    %805 = vmatmul.f32.gmra.mxu0 %v804
    %v806 = vpop.f32.mrf.mxu0
    %v807 = vadd.f32 %v753, %v806
    %808 = vdwg.mxu0
    %v809 = vand.u32 %v206, 4294901760
    %810 = vmatpush.msra.mxu0 %v809
    %v811 = vand.u32 %v204, 4294901760
    %812 = vmatpush.msra.mxu0 %v811
    %v813 = vand.u32 %v202, 4294901760
    %814 = vmatpush.msra.mxu0 %v813
    %v815 = vand.u32 %v200, 4294901760
    %816 = vmatpush.msra.mxu0 %v815
    %v817 = vand.u32 %v198, 4294901760
    %818 = vmatpush.msra.mxu0 %v817
    %v819 = vand.u32 %v196, 4294901760
    %820 = vmatpush.msra.mxu0 %v819
    %v821 = vand.u32 %v194, 4294901760
    %822 = vmatpush.msra.mxu0 %v821
    %v823 = vand.u32 %v192, 4294901760
    %824 = vmatpush.msra.mxu0 %v823
    %v825 = vand.u32 %v190, 4294901760
    %826 = vmatpush.msra.mxu0 %v825
    %v827 = vand.u32 %v188, 4294901760
    %828 = vmatpush.msra.mxu0 %v827
    %v829 = vand.u32 %v186, 4294901760
    %830 = vmatpush.msra.mxu0 %v829
    %v831 = vand.u32 %v184, 4294901760
    %832 = vmatpush.msra.mxu0 %v831
    %v833 = vand.u32 %v182, 4294901760
    %834 = vmatpush.msra.mxu0 %v833
    %v835 = vand.u32 %v180, 4294901760
    %836 = vmatpush.msra.mxu0 %v835
    %v837 = vand.u32 %v178, 4294901760
    %838 = vmatpush.msra.mxu0 %v837
    %v839 = vand.u32 %v176, 4294901760
    %840 = vmatpush.msra.mxu0 %v839
    %v841 = vand.u32 %v133, 4294901760
    %v842 = vsub.f32 %v133, %v841
    %v843 = vand.u32 %v842, 4294901760
    %844 = vmatmul.f32.gmra.mxu0 %v843
    %v845 = vpop.f32.mrf.mxu0
    %v846 = vadd.f32 %v807, %v845
    %847 = vdwg.mxu0
    %v848 = vand.u32 %v206, 4294901760
    %v849 = vsub.f32 %v206, %v848
    %v850 = vand.u32 %v849, 4294901760
    %851 = vmatpush.msra.mxu0 %v850
    %v852 = vand.u32 %v204, 4294901760
    %v853 = vsub.f32 %v204, %v852
    %v854 = vand.u32 %v853, 4294901760
    %855 = vmatpush.msra.mxu0 %v854
    %v856 = vand.u32 %v202, 4294901760
    %v857 = vsub.f32 %v202, %v856
    %v858 = vand.u32 %v857, 4294901760
    %859 = vmatpush.msra.mxu0 %v858
    %v860 = vand.u32 %v200, 4294901760
    %v861 = vsub.f32 %v200, %v860
    %v862 = vand.u32 %v861, 4294901760
    %863 = vmatpush.msra.mxu0 %v862
    %v864 = vand.u32 %v198, 4294901760
    %v865 = vsub.f32 %v198, %v864
    %v866 = vand.u32 %v865, 4294901760
    %867 = vmatpush.msra.mxu0 %v866
    %v868 = vand.u32 %v196, 4294901760
    %v869 = vsub.f32 %v196, %v868
    %v870 = vand.u32 %v869, 4294901760
    %871 = vmatpush.msra.mxu0 %v870
    %v872 = vand.u32 %v194, 4294901760
    %v873 = vsub.f32 %v194, %v872
    %v874 = vand.u32 %v873, 4294901760
    %875 = vmatpush.msra.mxu0 %v874
    %v876 = vand.u32 %v192, 4294901760
    %v877 = vsub.f32 %v192, %v876
    %v878 = vand.u32 %v877, 4294901760
    %879 = vmatpush.msra.mxu0 %v878
    %v880 = vand.u32 %v190, 4294901760
    %v881 = vsub.f32 %v190, %v880
    %v882 = vand.u32 %v881, 4294901760
    %883 = vmatpush.msra.mxu0 %v882
    %v884 = vand.u32 %v188, 4294901760
    %v885 = vsub.f32 %v188, %v884
    %v886 = vand.u32 %v885, 4294901760
    %887 = vmatpush.msra.mxu0 %v886
    %v888 = vand.u32 %v186, 4294901760
    %v889 = vsub.f32 %v186, %v888
    %v890 = vand.u32 %v889, 4294901760
    %891 = vmatpush.msra.mxu0 %v890
    %v892 = vand.u32 %v184, 4294901760
    %v893 = vsub.f32 %v184, %v892
    %v894 = vand.u32 %v893, 4294901760
    %895 = vmatpush.msra.mxu0 %v894
    %v896 = vand.u32 %v182, 4294901760
    %v897 = vsub.f32 %v182, %v896
    %v898 = vand.u32 %v897, 4294901760
    %899 = vmatpush.msra.mxu0 %v898
    %v900 = vand.u32 %v180, 4294901760
    %v901 = vsub.f32 %v180, %v900
    %v902 = vand.u32 %v901, 4294901760
    %903 = vmatpush.msra.mxu0 %v902
    %v904 = vand.u32 %v178, 4294901760
    %v905 = vsub.f32 %v178, %v904
    %v906 = vand.u32 %v905, 4294901760
    %907 = vmatpush.msra.mxu0 %v906
    %v908 = vand.u32 %v176, 4294901760
    %v909 = vsub.f32 %v176, %v908
    %v910 = vand.u32 %v909, 4294901760
    %911 = vmatpush.msra.mxu0 %v910
    %v912 = vand.u32 %v133, 4294901760
    %913 = vmatmul.f32.gmra.mxu0 %v912
    %v914 = vpop.f32.mrf.mxu0
    %v915 = vadd.f32 %v846, %v914
    %916 = vdwg.mxu0
    %v917 = vand.u32 %v206, 4294901760
    %918 = vmatpush.msra.mxu0 %v917
    %v919 = vand.u32 %v204, 4294901760
    %920 = vmatpush.msra.mxu0 %v919
    %v921 = vand.u32 %v202, 4294901760
    %922 = vmatpush.msra.mxu0 %v921
    %v923 = vand.u32 %v200, 4294901760
    %924 = vmatpush.msra.mxu0 %v923
    %v925 = vand.u32 %v198, 4294901760
    %926 = vmatpush.msra.mxu0 %v925
    %v927 = vand.u32 %v196, 4294901760
    %928 = vmatpush.msra.mxu0 %v927
    %v929 = vand.u32 %v194, 4294901760
    %930 = vmatpush.msra.mxu0 %v929
    %v931 = vand.u32 %v192, 4294901760
    %932 = vmatpush.msra.mxu0 %v931
    %v933 = vand.u32 %v190, 4294901760
    %934 = vmatpush.msra.mxu0 %v933
    %v935 = vand.u32 %v188, 4294901760
    %936 = vmatpush.msra.mxu0 %v935
    %v937 = vand.u32 %v186, 4294901760
    %938 = vmatpush.msra.mxu0 %v937
    %v939 = vand.u32 %v184, 4294901760
    %940 = vmatpush.msra.mxu0 %v939
    %v941 = vand.u32 %v182, 4294901760
    %942 = vmatpush.msra.mxu0 %v941
    %v943 = vand.u32 %v180, 4294901760
    %944 = vmatpush.msra.mxu0 %v943
    %v945 = vand.u32 %v178, 4294901760
    %946 = vmatpush.msra.mxu0 %v945
    %v947 = vand.u32 %v176, 4294901760
    %948 = vmatpush.msra.mxu0 %v947
    %v949 = vand.u32 %v133, 4294901760
    %950 = vmatmul.f32.gmra.mxu0 %v949
    %v951 = vpop.f32.mrf.mxu0
    %v952 = vadd.f32 %v915, %v951
    %953 = vdwg.mxu0
    %v954 = vand.u32 %v238, 4294901760
    %955 = vmatpush.msra.mxu0 %v954
    %v956 = vand.u32 %v236, 4294901760
    %957 = vmatpush.msra.mxu0 %v956
    %v958 = vand.u32 %v234, 4294901760
    %959 = vmatpush.msra.mxu0 %v958
    %v960 = vand.u32 %v232, 4294901760
    %961 = vmatpush.msra.mxu0 %v960
    %v962 = vand.u32 %v230, 4294901760
    %963 = vmatpush.msra.mxu0 %v962
    %v964 = vand.u32 %v228, 4294901760
    %965 = vmatpush.msra.mxu0 %v964
    %v966 = vand.u32 %v226, 4294901760
    %967 = vmatpush.msra.mxu0 %v966
    %v968 = vand.u32 %v224, 4294901760
    %969 = vmatpush.msra.mxu0 %v968
    %v970 = vand.u32 %v222, 4294901760
    %971 = vmatpush.msra.mxu0 %v970
    %v972 = vand.u32 %v220, 4294901760
    %973 = vmatpush.msra.mxu0 %v972
    %v974 = vand.u32 %v218, 4294901760
    %975 = vmatpush.msra.mxu0 %v974
    %v976 = vand.u32 %v216, 4294901760
    %977 = vmatpush.msra.mxu0 %v976
    %v978 = vand.u32 %v214, 4294901760
    %979 = vmatpush.msra.mxu0 %v978
    %v980 = vand.u32 %v212, 4294901760
    %981 = vmatpush.msra.mxu0 %v980
    %v982 = vand.u32 %v210, 4294901760
    %983 = vmatpush.msra.mxu0 %v982
    %v984 = vand.u32 %v208, 4294901760
    %985 = vmatpush.msra.mxu0 %v984
    %v986 = vand.u32 %v140, 4294901760
    %v987 = vsub.f32 %v140, %v986
    %v988 = vand.u32 %v987, 4294901760
    %v989 = vsub.f32 %v987, %v988
    %v990 = vand.u32 %v989, 4294901760
    %991 = vmatmul.f32.gmra.mxu0 %v990
    %v992 = vpop.f32.mrf.mxu0
    %v993 = vadd.f32 %v952, %v992
    %994 = vdwg.mxu0
    %v995 = vand.u32 %v238, 4294901760
    %v996 = vsub.f32 %v238, %v995
    %v997 = vand.u32 %v996, 4294901760
    %v998 = vsub.f32 %v996, %v997
    %v999 = vand.u32 %v998, 4294901760
    %1000 = vmatpush.msra.mxu0 %v999
    %v1001 = vand.u32 %v236, 4294901760
    %v1002 = vsub.f32 %v236, %v1001
    %v1003 = vand.u32 %v1002, 4294901760
    %v1004 = vsub.f32 %v1002, %v1003
    %v1005 = vand.u32 %v1004, 4294901760
    %1006 = vmatpush.msra.mxu0 %v1005
    %v1007 = vand.u32 %v234, 4294901760
    %v1008 = vsub.f32 %v234, %v1007
    %v1009 = vand.u32 %v1008, 4294901760
    %v1010 = vsub.f32 %v1008, %v1009
    %v1011 = vand.u32 %v1010, 4294901760
    %1012 = vmatpush.msra.mxu0 %v1011
    %v1013 = vand.u32 %v232, 4294901760
    %v1014 = vsub.f32 %v232, %v1013
    %v1015 = vand.u32 %v1014, 4294901760
    %v1016 = vsub.f32 %v1014, %v1015
    %v1017 = vand.u32 %v1016, 4294901760
    %1018 = vmatpush.msra.mxu0 %v1017
    %v1019 = vand.u32 %v230, 4294901760
    %v1020 = vsub.f32 %v230, %v1019
    %v1021 = vand.u32 %v1020, 4294901760
    %v1022 = vsub.f32 %v1020, %v1021
    %v1023 = vand.u32 %v1022, 4294901760
    %1024 = vmatpush.msra.mxu0 %v1023
    %v1025 = vand.u32 %v228, 4294901760
    %v1026 = vsub.f32 %v228, %v1025
    %v1027 = vand.u32 %v1026, 4294901760
    %v1028 = vsub.f32 %v1026, %v1027
    %v1029 = vand.u32 %v1028, 4294901760
    %1030 = vmatpush.msra.mxu0 %v1029
    %v1031 = vand.u32 %v226, 4294901760
    %v1032 = vsub.f32 %v226, %v1031
    %v1033 = vand.u32 %v1032, 4294901760
    %v1034 = vsub.f32 %v1032, %v1033
    %v1035 = vand.u32 %v1034, 4294901760
    %1036 = vmatpush.msra.mxu0 %v1035
    %v1037 = vand.u32 %v224, 4294901760
    %v1038 = vsub.f32 %v224, %v1037
    %v1039 = vand.u32 %v1038, 4294901760
    %v1040 = vsub.f32 %v1038, %v1039
    %v1041 = vand.u32 %v1040, 4294901760
    %1042 = vmatpush.msra.mxu0 %v1041
    %v1043 = vand.u32 %v222, 4294901760
    %v1044 = vsub.f32 %v222, %v1043
    %v1045 = vand.u32 %v1044, 4294901760
    %v1046 = vsub.f32 %v1044, %v1045
    %v1047 = vand.u32 %v1046, 4294901760
    %1048 = vmatpush.msra.mxu0 %v1047
    %v1049 = vand.u32 %v220, 4294901760
    %v1050 = vsub.f32 %v220, %v1049
    %v1051 = vand.u32 %v1050, 4294901760
    %v1052 = vsub.f32 %v1050, %v1051
    %v1053 = vand.u32 %v1052, 4294901760
    %1054 = vmatpush.msra.mxu0 %v1053
    %v1055 = vand.u32 %v218, 4294901760
    %v1056 = vsub.f32 %v218, %v1055
    %v1057 = vand.u32 %v1056, 4294901760
    %v1058 = vsub.f32 %v1056, %v1057
    %v1059 = vand.u32 %v1058, 4294901760
    %1060 = vmatpush.msra.mxu0 %v1059
    %v1061 = vand.u32 %v216, 4294901760
    %v1062 = vsub.f32 %v216, %v1061
    %v1063 = vand.u32 %v1062, 4294901760
    %v1064 = vsub.f32 %v1062, %v1063
    %v1065 = vand.u32 %v1064, 4294901760
    %1066 = vmatpush.msra.mxu0 %v1065
    %v1067 = vand.u32 %v214, 4294901760
    %v1068 = vsub.f32 %v214, %v1067
    %v1069 = vand.u32 %v1068, 4294901760
    %v1070 = vsub.f32 %v1068, %v1069
    %v1071 = vand.u32 %v1070, 4294901760
    %1072 = vmatpush.msra.mxu0 %v1071
    %v1073 = vand.u32 %v212, 4294901760
    %v1074 = vsub.f32 %v212, %v1073
    %v1075 = vand.u32 %v1074, 4294901760
    %v1076 = vsub.f32 %v1074, %v1075
    %v1077 = vand.u32 %v1076, 4294901760
    %1078 = vmatpush.msra.mxu0 %v1077
    %v1079 = vand.u32 %v210, 4294901760
    %v1080 = vsub.f32 %v210, %v1079
    %v1081 = vand.u32 %v1080, 4294901760
    %v1082 = vsub.f32 %v1080, %v1081
    %v1083 = vand.u32 %v1082, 4294901760
    %1084 = vmatpush.msra.mxu0 %v1083
    %v1085 = vand.u32 %v208, 4294901760
    %v1086 = vsub.f32 %v208, %v1085
    %v1087 = vand.u32 %v1086, 4294901760
    %v1088 = vsub.f32 %v1086, %v1087
    %v1089 = vand.u32 %v1088, 4294901760
    %1090 = vmatpush.msra.mxu0 %v1089
    %v1091 = vand.u32 %v140, 4294901760
    %1092 = vmatmul.f32.gmra.mxu0 %v1091
    %v1093 = vpop.f32.mrf.mxu0
    %v1094 = vadd.f32 %v993, %v1093
    %1095 = vdwg.mxu0
    %v1096 = vand.u32 %v238, 4294901760
    %v1097 = vsub.f32 %v238, %v1096
    %1098 = vmatpush.msra.mxu0 %v1097
    %v1099 = vand.u32 %v236, 4294901760
    %v1100 = vsub.f32 %v236, %v1099
    %1101 = vmatpush.msra.mxu0 %v1100
    %v1102 = vand.u32 %v234, 4294901760
    %v1103 = vsub.f32 %v234, %v1102
    %1104 = vmatpush.msra.mxu0 %v1103
    %v1105 = vand.u32 %v232, 4294901760
    %v1106 = vsub.f32 %v232, %v1105
    %1107 = vmatpush.msra.mxu0 %v1106
    %v1108 = vand.u32 %v230, 4294901760
    %v1109 = vsub.f32 %v230, %v1108
    %1110 = vmatpush.msra.mxu0 %v1109
    %v1111 = vand.u32 %v228, 4294901760
    %v1112 = vsub.f32 %v228, %v1111
    %1113 = vmatpush.msra.mxu0 %v1112
    %v1114 = vand.u32 %v226, 4294901760
    %v1115 = vsub.f32 %v226, %v1114
    %1116 = vmatpush.msra.mxu0 %v1115
    %v1117 = vand.u32 %v224, 4294901760
    %v1118 = vsub.f32 %v224, %v1117
    %1119 = vmatpush.msra.mxu0 %v1118
    %v1120 = vand.u32 %v222, 4294901760
    %v1121 = vsub.f32 %v222, %v1120
    %1122 = vmatpush.msra.mxu0 %v1121
    %v1123 = vand.u32 %v220, 4294901760
    %v1124 = vsub.f32 %v220, %v1123
    %1125 = vmatpush.msra.mxu0 %v1124
    %v1126 = vand.u32 %v218, 4294901760
    %v1127 = vsub.f32 %v218, %v1126
    %1128 = vmatpush.msra.mxu0 %v1127
    %v1129 = vand.u32 %v216, 4294901760
    %v1130 = vsub.f32 %v216, %v1129
    %1131 = vmatpush.msra.mxu0 %v1130
    %v1132 = vand.u32 %v214, 4294901760
    %v1133 = vsub.f32 %v214, %v1132
    %1134 = vmatpush.msra.mxu0 %v1133
    %v1135 = vand.u32 %v212, 4294901760
    %v1136 = vsub.f32 %v212, %v1135
    %1137 = vmatpush.msra.mxu0 %v1136
    %v1138 = vand.u32 %v210, 4294901760
    %v1139 = vsub.f32 %v210, %v1138
    %1140 = vmatpush.msra.mxu0 %v1139
    %v1141 = vand.u32 %v208, 4294901760
    %v1142 = vsub.f32 %v208, %v1141
    %1143 = vmatpush.msra.mxu0 %v1142
    %v1144 = vand.u32 %v140, 4294901760
    %v1145 = vsub.f32 %v140, %v1144
    %1146 = vmatmul.f32.gmra.mxu0 %v1145
    %v1147 = vpop.f32.mrf.mxu0
    %v1148 = vadd.f32 %v1094, %v1147
    %1149 = vdwg.mxu0
    %v1150 = vand.u32 %v238, 4294901760
    %1151 = vmatpush.msra.mxu0 %v1150
    %v1152 = vand.u32 %v236, 4294901760
    %1153 = vmatpush.msra.mxu0 %v1152
    %v1154 = vand.u32 %v234, 4294901760
    %1155 = vmatpush.msra.mxu0 %v1154
    %v1156 = vand.u32 %v232, 4294901760
    %1157 = vmatpush.msra.mxu0 %v1156
    %v1158 = vand.u32 %v230, 4294901760
    %1159 = vmatpush.msra.mxu0 %v1158
    %v1160 = vand.u32 %v228, 4294901760
    %1161 = vmatpush.msra.mxu0 %v1160
    %v1162 = vand.u32 %v226, 4294901760
    %1163 = vmatpush.msra.mxu0 %v1162
    %v1164 = vand.u32 %v224, 4294901760
    %1165 = vmatpush.msra.mxu0 %v1164
    %v1166 = vand.u32 %v222, 4294901760
    %1167 = vmatpush.msra.mxu0 %v1166
    %v1168 = vand.u32 %v220, 4294901760
    %1169 = vmatpush.msra.mxu0 %v1168
    %v1170 = vand.u32 %v218, 4294901760
    %1171 = vmatpush.msra.mxu0 %v1170
    %v1172 = vand.u32 %v216, 4294901760
    %1173 = vmatpush.msra.mxu0 %v1172
    %v1174 = vand.u32 %v214, 4294901760
    %1175 = vmatpush.msra.mxu0 %v1174
    %v1176 = vand.u32 %v212, 4294901760
    %1177 = vmatpush.msra.mxu0 %v1176
    %v1178 = vand.u32 %v210, 4294901760
    %1179 = vmatpush.msra.mxu0 %v1178
    %v1180 = vand.u32 %v208, 4294901760
    %1181 = vmatpush.msra.mxu0 %v1180
    %v1182 = vand.u32 %v140, 4294901760
    %v1183 = vsub.f32 %v140, %v1182
    %v1184 = vand.u32 %v1183, 4294901760
    %1185 = vmatmul.f32.gmra.mxu0 %v1184
    %v1186 = vpop.f32.mrf.mxu0
    %v1187 = vadd.f32 %v1148, %v1186
    %1188 = vdwg.mxu0
    %v1189 = vand.u32 %v238, 4294901760
    %v1190 = vsub.f32 %v238, %v1189
    %v1191 = vand.u32 %v1190, 4294901760
    %1192 = vmatpush.msra.mxu0 %v1191
    %v1193 = vand.u32 %v236, 4294901760
    %v1194 = vsub.f32 %v236, %v1193
    %v1195 = vand.u32 %v1194, 4294901760
    %1196 = vmatpush.msra.mxu0 %v1195
    %v1197 = vand.u32 %v234, 4294901760
    %v1198 = vsub.f32 %v234, %v1197
    %v1199 = vand.u32 %v1198, 4294901760
    %1200 = vmatpush.msra.mxu0 %v1199
    %v1201 = vand.u32 %v232, 4294901760
    %v1202 = vsub.f32 %v232, %v1201
    %v1203 = vand.u32 %v1202, 4294901760
    %1204 = vmatpush.msra.mxu0 %v1203
    %v1205 = vand.u32 %v230, 4294901760
    %v1206 = vsub.f32 %v230, %v1205
    %v1207 = vand.u32 %v1206, 4294901760
    %1208 = vmatpush.msra.mxu0 %v1207
    %v1209 = vand.u32 %v228, 4294901760
    %v1210 = vsub.f32 %v228, %v1209
    %v1211 = vand.u32 %v1210, 4294901760
    %1212 = vmatpush.msra.mxu0 %v1211
    %v1213 = vand.u32 %v226, 4294901760
    %v1214 = vsub.f32 %v226, %v1213
    %v1215 = vand.u32 %v1214, 4294901760
    %1216 = vmatpush.msra.mxu0 %v1215
    %v1217 = vand.u32 %v224, 4294901760
    %v1218 = vsub.f32 %v224, %v1217
    %v1219 = vand.u32 %v1218, 4294901760
    %1220 = vmatpush.msra.mxu0 %v1219
    %v1221 = vand.u32 %v222, 4294901760
    %v1222 = vsub.f32 %v222, %v1221
    %v1223 = vand.u32 %v1222, 4294901760
    %1224 = vmatpush.msra.mxu0 %v1223
    %v1225 = vand.u32 %v220, 4294901760
    %v1226 = vsub.f32 %v220, %v1225
    %v1227 = vand.u32 %v1226, 4294901760
    %1228 = vmatpush.msra.mxu0 %v1227
    %v1229 = vand.u32 %v218, 4294901760
    %v1230 = vsub.f32 %v218, %v1229
    %v1231 = vand.u32 %v1230, 4294901760
    %1232 = vmatpush.msra.mxu0 %v1231
    %v1233 = vand.u32 %v216, 4294901760
    %v1234 = vsub.f32 %v216, %v1233
    %v1235 = vand.u32 %v1234, 4294901760
    %1236 = vmatpush.msra.mxu0 %v1235
    %v1237 = vand.u32 %v214, 4294901760
    %v1238 = vsub.f32 %v214, %v1237
    %v1239 = vand.u32 %v1238, 4294901760
    %1240 = vmatpush.msra.mxu0 %v1239
    %v1241 = vand.u32 %v212, 4294901760
    %v1242 = vsub.f32 %v212, %v1241
    %v1243 = vand.u32 %v1242, 4294901760
    %1244 = vmatpush.msra.mxu0 %v1243
    %v1245 = vand.u32 %v210, 4294901760
    %v1246 = vsub.f32 %v210, %v1245
    %v1247 = vand.u32 %v1246, 4294901760
    %1248 = vmatpush.msra.mxu0 %v1247
    %v1249 = vand.u32 %v208, 4294901760
    %v1250 = vsub.f32 %v208, %v1249
    %v1251 = vand.u32 %v1250, 4294901760
    %1252 = vmatpush.msra.mxu0 %v1251
    %v1253 = vand.u32 %v140, 4294901760
    %1254 = vmatmul.f32.gmra.mxu0 %v1253
    %v1255 = vpop.f32.mrf.mxu0
    %v1256 = vadd.f32 %v1187, %v1255
    %1257 = vdwg.mxu0
    %v1258 = vand.u32 %v238, 4294901760
    %1259 = vmatpush.msra.mxu0 %v1258
    %v1260 = vand.u32 %v236, 4294901760
    %1261 = vmatpush.msra.mxu0 %v1260
    %v1262 = vand.u32 %v234, 4294901760
    %1263 = vmatpush.msra.mxu0 %v1262
    %v1264 = vand.u32 %v232, 4294901760
    %1265 = vmatpush.msra.mxu0 %v1264
    %v1266 = vand.u32 %v230, 4294901760
    %1267 = vmatpush.msra.mxu0 %v1266
    %v1268 = vand.u32 %v228, 4294901760
    %1269 = vmatpush.msra.mxu0 %v1268
    %v1270 = vand.u32 %v226, 4294901760
    %1271 = vmatpush.msra.mxu0 %v1270
    %v1272 = vand.u32 %v224, 4294901760
    %1273 = vmatpush.msra.mxu0 %v1272
    %v1274 = vand.u32 %v222, 4294901760
    %1275 = vmatpush.msra.mxu0 %v1274
    %v1276 = vand.u32 %v220, 4294901760
    %1277 = vmatpush.msra.mxu0 %v1276
    %v1278 = vand.u32 %v218, 4294901760
    %1279 = vmatpush.msra.mxu0 %v1278
    %v1280 = vand.u32 %v216, 4294901760
    %1281 = vmatpush.msra.mxu0 %v1280
    %v1282 = vand.u32 %v214, 4294901760
    %1283 = vmatpush.msra.mxu0 %v1282
    %v1284 = vand.u32 %v212, 4294901760
    %1285 = vmatpush.msra.mxu0 %v1284
    %v1286 = vand.u32 %v210, 4294901760
    %1287 = vmatpush.msra.mxu0 %v1286
    %v1288 = vand.u32 %v208, 4294901760
    %1289 = vmatpush.msra.mxu0 %v1288
    %v1290 = vand.u32 %v140, 4294901760
    %1291 = vmatmul.f32.gmra.mxu0 %v1290
    %v1292 = vpop.f32.mrf.mxu0
    %v1293 = vadd.f32 %v1256, %v1292
    %1294 = vdwg.mxu0
    %v1295 = vand.u32 %v270, 4294901760
    %1296 = vmatpush.msra.mxu0 %v1295
    %v1297 = vand.u32 %v268, 4294901760
    %1298 = vmatpush.msra.mxu0 %v1297
    %v1299 = vand.u32 %v266, 4294901760
    %1300 = vmatpush.msra.mxu0 %v1299
    %v1301 = vand.u32 %v264, 4294901760
    %1302 = vmatpush.msra.mxu0 %v1301
    %v1303 = vand.u32 %v262, 4294901760
    %1304 = vmatpush.msra.mxu0 %v1303
    %v1305 = vand.u32 %v260, 4294901760
    %1306 = vmatpush.msra.mxu0 %v1305
    %v1307 = vand.u32 %v258, 4294901760
    %1308 = vmatpush.msra.mxu0 %v1307
    %v1309 = vand.u32 %v256, 4294901760
    %1310 = vmatpush.msra.mxu0 %v1309
    %v1311 = vand.u32 %v254, 4294901760
    %1312 = vmatpush.msra.mxu0 %v1311
    %v1313 = vand.u32 %v252, 4294901760
    %1314 = vmatpush.msra.mxu0 %v1313
    %v1315 = vand.u32 %v250, 4294901760
    %1316 = vmatpush.msra.mxu0 %v1315
    %v1317 = vand.u32 %v248, 4294901760
    %1318 = vmatpush.msra.mxu0 %v1317
    %v1319 = vand.u32 %v246, 4294901760
    %1320 = vmatpush.msra.mxu0 %v1319
    %v1321 = vand.u32 %v244, 4294901760
    %1322 = vmatpush.msra.mxu0 %v1321
    %v1323 = vand.u32 %v242, 4294901760
    %1324 = vmatpush.msra.mxu0 %v1323
    %v1325 = vand.u32 %v240, 4294901760
    %1326 = vmatpush.msra.mxu0 %v1325
    %v1327 = vand.u32 %v141, 4294901760
    %v1328 = vsub.f32 %v141, %v1327
    %v1329 = vand.u32 %v1328, 4294901760
    %v1330 = vsub.f32 %v1328, %v1329
    %v1331 = vand.u32 %v1330, 4294901760
    %1332 = vmatmul.f32.gmra.mxu0 %v1331
    %v1333 = vpop.f32.mrf.mxu0
    %v1334 = vadd.f32 %v1293, %v1333
    %1335 = vdwg.mxu0
    %v1336 = vand.u32 %v270, 4294901760
    %v1337 = vsub.f32 %v270, %v1336
    %v1338 = vand.u32 %v1337, 4294901760
    %v1339 = vsub.f32 %v1337, %v1338
    %v1340 = vand.u32 %v1339, 4294901760
    %1341 = vmatpush.msra.mxu0 %v1340
    %v1342 = vand.u32 %v268, 4294901760
    %v1343 = vsub.f32 %v268, %v1342
    %v1344 = vand.u32 %v1343, 4294901760
    %v1345 = vsub.f32 %v1343, %v1344
    %v1346 = vand.u32 %v1345, 4294901760
    %1347 = vmatpush.msra.mxu0 %v1346
    %v1348 = vand.u32 %v266, 4294901760
    %v1349 = vsub.f32 %v266, %v1348
    %v1350 = vand.u32 %v1349, 4294901760
    %v1351 = vsub.f32 %v1349, %v1350
    %v1352 = vand.u32 %v1351, 4294901760
    %1353 = vmatpush.msra.mxu0 %v1352
    %v1354 = vand.u32 %v264, 4294901760
    %v1355 = vsub.f32 %v264, %v1354
    %v1356 = vand.u32 %v1355, 4294901760
    %v1357 = vsub.f32 %v1355, %v1356
    %v1358 = vand.u32 %v1357, 4294901760
    %1359 = vmatpush.msra.mxu0 %v1358
    %v1360 = vand.u32 %v262, 4294901760
    %v1361 = vsub.f32 %v262, %v1360
    %v1362 = vand.u32 %v1361, 4294901760
    %v1363 = vsub.f32 %v1361, %v1362
    %v1364 = vand.u32 %v1363, 4294901760
    %1365 = vmatpush.msra.mxu0 %v1364
    %v1366 = vand.u32 %v260, 4294901760
    %v1367 = vsub.f32 %v260, %v1366
    %v1368 = vand.u32 %v1367, 4294901760
    %v1369 = vsub.f32 %v1367, %v1368
    %v1370 = vand.u32 %v1369, 4294901760
    %1371 = vmatpush.msra.mxu0 %v1370
    %v1372 = vand.u32 %v258, 4294901760
    %v1373 = vsub.f32 %v258, %v1372
    %v1374 = vand.u32 %v1373, 4294901760
    %v1375 = vsub.f32 %v1373, %v1374
    %v1376 = vand.u32 %v1375, 4294901760
    %1377 = vmatpush.msra.mxu0 %v1376
    %v1378 = vand.u32 %v256, 4294901760
    %v1379 = vsub.f32 %v256, %v1378
    %v1380 = vand.u32 %v1379, 4294901760
    %v1381 = vsub.f32 %v1379, %v1380
    %v1382 = vand.u32 %v1381, 4294901760
    %1383 = vmatpush.msra.mxu0 %v1382
    %v1384 = vand.u32 %v254, 4294901760
    %v1385 = vsub.f32 %v254, %v1384
    %v1386 = vand.u32 %v1385, 4294901760
    %v1387 = vsub.f32 %v1385, %v1386
    %v1388 = vand.u32 %v1387, 4294901760
    %1389 = vmatpush.msra.mxu0 %v1388
    %v1390 = vand.u32 %v252, 4294901760
    %v1391 = vsub.f32 %v252, %v1390
    %v1392 = vand.u32 %v1391, 4294901760
    %v1393 = vsub.f32 %v1391, %v1392
    %v1394 = vand.u32 %v1393, 4294901760
    %1395 = vmatpush.msra.mxu0 %v1394
    %v1396 = vand.u32 %v250, 4294901760
    %v1397 = vsub.f32 %v250, %v1396
    %v1398 = vand.u32 %v1397, 4294901760
    %v1399 = vsub.f32 %v1397, %v1398
    %v1400 = vand.u32 %v1399, 4294901760
    %1401 = vmatpush.msra.mxu0 %v1400
    %v1402 = vand.u32 %v248, 4294901760
    %v1403 = vsub.f32 %v248, %v1402
    %v1404 = vand.u32 %v1403, 4294901760
    %v1405 = vsub.f32 %v1403, %v1404
    %v1406 = vand.u32 %v1405, 4294901760
    %1407 = vmatpush.msra.mxu0 %v1406
    %v1408 = vand.u32 %v246, 4294901760
    %v1409 = vsub.f32 %v246, %v1408
    %v1410 = vand.u32 %v1409, 4294901760
    %v1411 = vsub.f32 %v1409, %v1410
    %v1412 = vand.u32 %v1411, 4294901760
    %1413 = vmatpush.msra.mxu0 %v1412
    %v1414 = vand.u32 %v244, 4294901760
    %v1415 = vsub.f32 %v244, %v1414
    %v1416 = vand.u32 %v1415, 4294901760
    %v1417 = vsub.f32 %v1415, %v1416
    %v1418 = vand.u32 %v1417, 4294901760
    %1419 = vmatpush.msra.mxu0 %v1418
    %v1420 = vand.u32 %v242, 4294901760
    %v1421 = vsub.f32 %v242, %v1420
    %v1422 = vand.u32 %v1421, 4294901760
    %v1423 = vsub.f32 %v1421, %v1422
    %v1424 = vand.u32 %v1423, 4294901760
    %1425 = vmatpush.msra.mxu0 %v1424
    %v1426 = vand.u32 %v240, 4294901760
    %v1427 = vsub.f32 %v240, %v1426
    %v1428 = vand.u32 %v1427, 4294901760
    %v1429 = vsub.f32 %v1427, %v1428
    %v1430 = vand.u32 %v1429, 4294901760
    %1431 = vmatpush.msra.mxu0 %v1430
    %v1432 = vand.u32 %v141, 4294901760
    %1433 = vmatmul.f32.gmra.mxu0 %v1432
    %v1434 = vpop.f32.mrf.mxu0
    %v1435 = vadd.f32 %v1334, %v1434
    %1436 = vdwg.mxu0
    %v1437 = vand.u32 %v270, 4294901760
    %v1438 = vsub.f32 %v270, %v1437
    %1439 = vmatpush.msra.mxu0 %v1438
    %v1440 = vand.u32 %v268, 4294901760
    %v1441 = vsub.f32 %v268, %v1440
    %1442 = vmatpush.msra.mxu0 %v1441
    %v1443 = vand.u32 %v266, 4294901760
    %v1444 = vsub.f32 %v266, %v1443
    %1445 = vmatpush.msra.mxu0 %v1444
    %v1446 = vand.u32 %v264, 4294901760
    %v1447 = vsub.f32 %v264, %v1446
    %1448 = vmatpush.msra.mxu0 %v1447
    %v1449 = vand.u32 %v262, 4294901760
    %v1450 = vsub.f32 %v262, %v1449
    %1451 = vmatpush.msra.mxu0 %v1450
    %v1452 = vand.u32 %v260, 4294901760
    %v1453 = vsub.f32 %v260, %v1452
    %1454 = vmatpush.msra.mxu0 %v1453
    %v1455 = vand.u32 %v258, 4294901760
    %v1456 = vsub.f32 %v258, %v1455
    %1457 = vmatpush.msra.mxu0 %v1456
    %v1458 = vand.u32 %v256, 4294901760
    %v1459 = vsub.f32 %v256, %v1458
    %1460 = vmatpush.msra.mxu0 %v1459
    %v1461 = vand.u32 %v254, 4294901760
    %v1462 = vsub.f32 %v254, %v1461
    %1463 = vmatpush.msra.mxu0 %v1462
    %v1464 = vand.u32 %v252, 4294901760
    %v1465 = vsub.f32 %v252, %v1464
    %1466 = vmatpush.msra.mxu0 %v1465
    %v1467 = vand.u32 %v250, 4294901760
    %v1468 = vsub.f32 %v250, %v1467
    %1469 = vmatpush.msra.mxu0 %v1468
    %v1470 = vand.u32 %v248, 4294901760
    %v1471 = vsub.f32 %v248, %v1470
    %1472 = vmatpush.msra.mxu0 %v1471
    %v1473 = vand.u32 %v246, 4294901760
    %v1474 = vsub.f32 %v246, %v1473
    %1475 = vmatpush.msra.mxu0 %v1474
    %v1476 = vand.u32 %v244, 4294901760
    %v1477 = vsub.f32 %v244, %v1476
    %1478 = vmatpush.msra.mxu0 %v1477
    %v1479 = vand.u32 %v242, 4294901760
    %v1480 = vsub.f32 %v242, %v1479
    %1481 = vmatpush.msra.mxu0 %v1480
    %v1482 = vand.u32 %v240, 4294901760
    %v1483 = vsub.f32 %v240, %v1482
    %1484 = vmatpush.msra.mxu0 %v1483
    %v1485 = vand.u32 %v141, 4294901760
    %v1486 = vsub.f32 %v141, %v1485
    %1487 = vmatmul.f32.gmra.mxu0 %v1486
    %v1488 = vpop.f32.mrf.mxu0
    %v1489 = vadd.f32 %v1435, %v1488
    %1490 = vdwg.mxu0
    %v1491 = vand.u32 %v270, 4294901760
    %1492 = vmatpush.msra.mxu0 %v1491
    %v1493 = vand.u32 %v268, 4294901760
    %1494 = vmatpush.msra.mxu0 %v1493
    %v1495 = vand.u32 %v266, 4294901760
    %1496 = vmatpush.msra.mxu0 %v1495
    %v1497 = vand.u32 %v264, 4294901760
    %1498 = vmatpush.msra.mxu0 %v1497
    %v1499 = vand.u32 %v262, 4294901760
    %1500 = vmatpush.msra.mxu0 %v1499
    %v1501 = vand.u32 %v260, 4294901760
    %1502 = vmatpush.msra.mxu0 %v1501
    %v1503 = vand.u32 %v258, 4294901760
    %1504 = vmatpush.msra.mxu0 %v1503
    %v1505 = vand.u32 %v256, 4294901760
    %1506 = vmatpush.msra.mxu0 %v1505
    %v1507 = vand.u32 %v254, 4294901760
    %1508 = vmatpush.msra.mxu0 %v1507
    %v1509 = vand.u32 %v252, 4294901760
    %1510 = vmatpush.msra.mxu0 %v1509
    %v1511 = vand.u32 %v250, 4294901760
    %1512 = vmatpush.msra.mxu0 %v1511
    %v1513 = vand.u32 %v248, 4294901760
    %1514 = vmatpush.msra.mxu0 %v1513
    %v1515 = vand.u32 %v246, 4294901760
    %1516 = vmatpush.msra.mxu0 %v1515
    %v1517 = vand.u32 %v244, 4294901760
    %1518 = vmatpush.msra.mxu0 %v1517
    %v1519 = vand.u32 %v242, 4294901760
    %1520 = vmatpush.msra.mxu0 %v1519
    %v1521 = vand.u32 %v240, 4294901760
    %1522 = vmatpush.msra.mxu0 %v1521
    %v1523 = vand.u32 %v141, 4294901760
    %v1524 = vsub.f32 %v141, %v1523
    %v1525 = vand.u32 %v1524, 4294901760
    %1526 = vmatmul.f32.gmra.mxu0 %v1525
    %v1527 = vpop.f32.mrf.mxu0
    %v1528 = vadd.f32 %v1489, %v1527
    %1529 = vdwg.mxu0
    %v1530 = vand.u32 %v270, 4294901760
    %v1531 = vsub.f32 %v270, %v1530
    %v1532 = vand.u32 %v1531, 4294901760
    %1533 = vmatpush.msra.mxu0 %v1532
    %v1534 = vand.u32 %v268, 4294901760
    %v1535 = vsub.f32 %v268, %v1534
    %v1536 = vand.u32 %v1535, 4294901760
    %1537 = vmatpush.msra.mxu0 %v1536
    %v1538 = vand.u32 %v266, 4294901760
    %v1539 = vsub.f32 %v266, %v1538
    %v1540 = vand.u32 %v1539, 4294901760
    %1541 = vmatpush.msra.mxu0 %v1540
    %v1542 = vand.u32 %v264, 4294901760
    %v1543 = vsub.f32 %v264, %v1542
    %v1544 = vand.u32 %v1543, 4294901760
    %1545 = vmatpush.msra.mxu0 %v1544
    %v1546 = vand.u32 %v262, 4294901760
    %v1547 = vsub.f32 %v262, %v1546
    %v1548 = vand.u32 %v1547, 4294901760
    %1549 = vmatpush.msra.mxu0 %v1548
    %v1550 = vand.u32 %v260, 4294901760
    %v1551 = vsub.f32 %v260, %v1550
    %v1552 = vand.u32 %v1551, 4294901760
    %1553 = vmatpush.msra.mxu0 %v1552
    %v1554 = vand.u32 %v258, 4294901760
    %v1555 = vsub.f32 %v258, %v1554
    %v1556 = vand.u32 %v1555, 4294901760
    %1557 = vmatpush.msra.mxu0 %v1556
    %v1558 = vand.u32 %v256, 4294901760
    %v1559 = vsub.f32 %v256, %v1558
    %v1560 = vand.u32 %v1559, 4294901760
    %1561 = vmatpush.msra.mxu0 %v1560
    %v1562 = vand.u32 %v254, 4294901760
    %v1563 = vsub.f32 %v254, %v1562
    %v1564 = vand.u32 %v1563, 4294901760
    %1565 = vmatpush.msra.mxu0 %v1564
    %v1566 = vand.u32 %v252, 4294901760
    %v1567 = vsub.f32 %v252, %v1566
    %v1568 = vand.u32 %v1567, 4294901760
    %1569 = vmatpush.msra.mxu0 %v1568
    %v1570 = vand.u32 %v250, 4294901760
    %v1571 = vsub.f32 %v250, %v1570
    %v1572 = vand.u32 %v1571, 4294901760
    %1573 = vmatpush.msra.mxu0 %v1572
    %v1574 = vand.u32 %v248, 4294901760
    %v1575 = vsub.f32 %v248, %v1574
    %v1576 = vand.u32 %v1575, 4294901760
    %1577 = vmatpush.msra.mxu0 %v1576
    %v1578 = vand.u32 %v246, 4294901760
    %v1579 = vsub.f32 %v246, %v1578
    %v1580 = vand.u32 %v1579, 4294901760
    %1581 = vmatpush.msra.mxu0 %v1580
    %v1582 = vand.u32 %v244, 4294901760
    %v1583 = vsub.f32 %v244, %v1582
    %v1584 = vand.u32 %v1583, 4294901760
    %1585 = vmatpush.msra.mxu0 %v1584
    %v1586 = vand.u32 %v242, 4294901760
    %v1587 = vsub.f32 %v242, %v1586
    %v1588 = vand.u32 %v1587, 4294901760
    %1589 = vmatpush.msra.mxu0 %v1588
    %v1590 = vand.u32 %v240, 4294901760
    %v1591 = vsub.f32 %v240, %v1590
    %v1592 = vand.u32 %v1591, 4294901760
    %1593 = vmatpush.msra.mxu0 %v1592
    %v1594 = vand.u32 %v141, 4294901760
    %1595 = vmatmul.f32.gmra.mxu0 %v1594
    %v1596 = vpop.f32.mrf.mxu0
    %v1597 = vadd.f32 %v1528, %v1596
    %1598 = vdwg.mxu0
    %v1599 = vand.u32 %v270, 4294901760
    %1600 = vmatpush.msra.mxu0 %v1599
    %v1601 = vand.u32 %v268, 4294901760
    %1602 = vmatpush.msra.mxu0 %v1601
    %v1603 = vand.u32 %v266, 4294901760
    %1604 = vmatpush.msra.mxu0 %v1603
    %v1605 = vand.u32 %v264, 4294901760
    %1606 = vmatpush.msra.mxu0 %v1605
    %v1607 = vand.u32 %v262, 4294901760
    %1608 = vmatpush.msra.mxu0 %v1607
    %v1609 = vand.u32 %v260, 4294901760
    %1610 = vmatpush.msra.mxu0 %v1609
    %v1611 = vand.u32 %v258, 4294901760
    %1612 = vmatpush.msra.mxu0 %v1611
    %v1613 = vand.u32 %v256, 4294901760
    %1614 = vmatpush.msra.mxu0 %v1613
    %v1615 = vand.u32 %v254, 4294901760
    %1616 = vmatpush.msra.mxu0 %v1615
    %v1617 = vand.u32 %v252, 4294901760
    %1618 = vmatpush.msra.mxu0 %v1617
    %v1619 = vand.u32 %v250, 4294901760
    %1620 = vmatpush.msra.mxu0 %v1619
    %v1621 = vand.u32 %v248, 4294901760
    %1622 = vmatpush.msra.mxu0 %v1621
    %v1623 = vand.u32 %v246, 4294901760
    %1624 = vmatpush.msra.mxu0 %v1623
    %v1625 = vand.u32 %v244, 4294901760
    %1626 = vmatpush.msra.mxu0 %v1625
    %v1627 = vand.u32 %v242, 4294901760
    %1628 = vmatpush.msra.mxu0 %v1627
    %v1629 = vand.u32 %v240, 4294901760
    %1630 = vmatpush.msra.mxu0 %v1629
    %v1631 = vand.u32 %v141, 4294901760
    %1632 = vmatmul.f32.gmra.mxu0 %v1631
    %v1633 = vpop.f32.mrf.mxu0
    %v1634 = vadd.f32 %v1597, %v1633
    %1635 = vdwg.mxu0
    %v1636 = vand.u32 %v175, 4294901760
    %1637 = vmatpush.msra.mxu0 %v1636
    %v1638 = vand.u32 %v173, 4294901760
    %1639 = vmatpush.msra.mxu0 %v1638
    %v1640 = vand.u32 %v171, 4294901760
    %1641 = vmatpush.msra.mxu0 %v1640
    %v1642 = vand.u32 %v169, 4294901760
    %1643 = vmatpush.msra.mxu0 %v1642
    %v1644 = vand.u32 %v167, 4294901760
    %1645 = vmatpush.msra.mxu0 %v1644
    %v1646 = vand.u32 %v165, 4294901760
    %1647 = vmatpush.msra.mxu0 %v1646
    %v1648 = vand.u32 %v163, 4294901760
    %1649 = vmatpush.msra.mxu0 %v1648
    %v1650 = vand.u32 %v161, 4294901760
    %1651 = vmatpush.msra.mxu0 %v1650
    %v1652 = vand.u32 %v159, 4294901760
    %1653 = vmatpush.msra.mxu0 %v1652
    %v1654 = vand.u32 %v157, 4294901760
    %1655 = vmatpush.msra.mxu0 %v1654
    %v1656 = vand.u32 %v155, 4294901760
    %1657 = vmatpush.msra.mxu0 %v1656
    %v1658 = vand.u32 %v153, 4294901760
    %1659 = vmatpush.msra.mxu0 %v1658
    %v1660 = vand.u32 %v151, 4294901760
    %1661 = vmatpush.msra.mxu0 %v1660
    %v1662 = vand.u32 %v149, 4294901760
    %1663 = vmatpush.msra.mxu0 %v1662
    %v1664 = vand.u32 %v147, 4294901760
    %1665 = vmatpush.msra.mxu0 %v1664
    %v1666 = vand.u32 %v145, 4294901760
    %1667 = vmatpush.msra.mxu0 %v1666
    %v1668 = vand.u32 %v132, 4294901760
    %v1669 = vsub.f32 %v132, %v1668
    %v1670 = vand.u32 %v1669, 4294901760
    %v1671 = vsub.f32 %v1669, %v1670
    %v1672 = vand.u32 %v1671, 4294901760
    %1673 = vmatmul.f32.gmra.mxu0 %v1672
    %v1674 = vpop.f32.mrf.mxu0
    %v1675 = vadd.f32 0.0, %v1674
    %1676 = vdwg.mxu0
    %v1677 = vand.u32 %v175, 4294901760
    %v1678 = vsub.f32 %v175, %v1677
    %v1679 = vand.u32 %v1678, 4294901760
    %v1680 = vsub.f32 %v1678, %v1679
    %v1681 = vand.u32 %v1680, 4294901760
    %1682 = vmatpush.msra.mxu0 %v1681
    %v1683 = vand.u32 %v173, 4294901760
    %v1684 = vsub.f32 %v173, %v1683
    %v1685 = vand.u32 %v1684, 4294901760
    %v1686 = vsub.f32 %v1684, %v1685
    %v1687 = vand.u32 %v1686, 4294901760
    %1688 = vmatpush.msra.mxu0 %v1687
    %v1689 = vand.u32 %v171, 4294901760
    %v1690 = vsub.f32 %v171, %v1689
    %v1691 = vand.u32 %v1690, 4294901760
    %v1692 = vsub.f32 %v1690, %v1691
    %v1693 = vand.u32 %v1692, 4294901760
    %1694 = vmatpush.msra.mxu0 %v1693
    %v1695 = vand.u32 %v169, 4294901760
    %v1696 = vsub.f32 %v169, %v1695
    %v1697 = vand.u32 %v1696, 4294901760
    %v1698 = vsub.f32 %v1696, %v1697
    %v1699 = vand.u32 %v1698, 4294901760
    %1700 = vmatpush.msra.mxu0 %v1699
    %v1701 = vand.u32 %v167, 4294901760
    %v1702 = vsub.f32 %v167, %v1701
    %v1703 = vand.u32 %v1702, 4294901760
    %v1704 = vsub.f32 %v1702, %v1703
    %v1705 = vand.u32 %v1704, 4294901760
    %1706 = vmatpush.msra.mxu0 %v1705
    %v1707 = vand.u32 %v165, 4294901760
    %v1708 = vsub.f32 %v165, %v1707
    %v1709 = vand.u32 %v1708, 4294901760
    %v1710 = vsub.f32 %v1708, %v1709
    %v1711 = vand.u32 %v1710, 4294901760
    %1712 = vmatpush.msra.mxu0 %v1711
    %v1713 = vand.u32 %v163, 4294901760
    %v1714 = vsub.f32 %v163, %v1713
    %v1715 = vand.u32 %v1714, 4294901760
    %v1716 = vsub.f32 %v1714, %v1715
    %v1717 = vand.u32 %v1716, 4294901760
    %1718 = vmatpush.msra.mxu0 %v1717
    %v1719 = vand.u32 %v161, 4294901760
    %v1720 = vsub.f32 %v161, %v1719
    %v1721 = vand.u32 %v1720, 4294901760
    %v1722 = vsub.f32 %v1720, %v1721
    %v1723 = vand.u32 %v1722, 4294901760
    %1724 = vmatpush.msra.mxu0 %v1723
    %v1725 = vand.u32 %v159, 4294901760
    %v1726 = vsub.f32 %v159, %v1725
    %v1727 = vand.u32 %v1726, 4294901760
    %v1728 = vsub.f32 %v1726, %v1727
    %v1729 = vand.u32 %v1728, 4294901760
    %1730 = vmatpush.msra.mxu0 %v1729
    %v1731 = vand.u32 %v157, 4294901760
    %v1732 = vsub.f32 %v157, %v1731
    %v1733 = vand.u32 %v1732, 4294901760
    %v1734 = vsub.f32 %v1732, %v1733
    %v1735 = vand.u32 %v1734, 4294901760
    %1736 = vmatpush.msra.mxu0 %v1735
    %v1737 = vand.u32 %v155, 4294901760
    %v1738 = vsub.f32 %v155, %v1737
    %v1739 = vand.u32 %v1738, 4294901760
    %v1740 = vsub.f32 %v1738, %v1739
    %v1741 = vand.u32 %v1740, 4294901760
    %1742 = vmatpush.msra.mxu0 %v1741
    %v1743 = vand.u32 %v153, 4294901760
    %v1744 = vsub.f32 %v153, %v1743
    %v1745 = vand.u32 %v1744, 4294901760
    %v1746 = vsub.f32 %v1744, %v1745
    %v1747 = vand.u32 %v1746, 4294901760
    %1748 = vmatpush.msra.mxu0 %v1747
    %v1749 = vand.u32 %v151, 4294901760
    %v1750 = vsub.f32 %v151, %v1749
    %v1751 = vand.u32 %v1750, 4294901760
    %v1752 = vsub.f32 %v1750, %v1751
    %v1753 = vand.u32 %v1752, 4294901760
    %1754 = vmatpush.msra.mxu0 %v1753
    %v1755 = vand.u32 %v149, 4294901760
    %v1756 = vsub.f32 %v149, %v1755
    %v1757 = vand.u32 %v1756, 4294901760
    %v1758 = vsub.f32 %v1756, %v1757
    %v1759 = vand.u32 %v1758, 4294901760
    %1760 = vmatpush.msra.mxu0 %v1759
    %v1761 = vand.u32 %v147, 4294901760
    %v1762 = vsub.f32 %v147, %v1761
    %v1763 = vand.u32 %v1762, 4294901760
    %v1764 = vsub.f32 %v1762, %v1763
    %v1765 = vand.u32 %v1764, 4294901760
    %1766 = vmatpush.msra.mxu0 %v1765
    %v1767 = vand.u32 %v145, 4294901760
    %v1768 = vsub.f32 %v145, %v1767
    %v1769 = vand.u32 %v1768, 4294901760
    %v1770 = vsub.f32 %v1768, %v1769
    %v1771 = vand.u32 %v1770, 4294901760
    %1772 = vmatpush.msra.mxu0 %v1771
    %v1773 = vand.u32 %v132, 4294901760
    %1774 = vmatmul.f32.gmra.mxu0 %v1773
    %v1775 = vpop.f32.mrf.mxu0
    %v1776 = vadd.f32 %v1675, %v1775
    %1777 = vdwg.mxu0
    %v1778 = vand.u32 %v175, 4294901760
    %v1779 = vsub.f32 %v175, %v1778
    %1780 = vmatpush.msra.mxu0 %v1779
    %v1781 = vand.u32 %v173, 4294901760
    %v1782 = vsub.f32 %v173, %v1781
    %1783 = vmatpush.msra.mxu0 %v1782
    %v1784 = vand.u32 %v171, 4294901760
    %v1785 = vsub.f32 %v171, %v1784
    %1786 = vmatpush.msra.mxu0 %v1785
    %v1787 = vand.u32 %v169, 4294901760
    %v1788 = vsub.f32 %v169, %v1787
    %1789 = vmatpush.msra.mxu0 %v1788
    %v1790 = vand.u32 %v167, 4294901760
    %v1791 = vsub.f32 %v167, %v1790
    %1792 = vmatpush.msra.mxu0 %v1791
    %v1793 = vand.u32 %v165, 4294901760
    %v1794 = vsub.f32 %v165, %v1793
    %1795 = vmatpush.msra.mxu0 %v1794
    %v1796 = vand.u32 %v163, 4294901760
    %v1797 = vsub.f32 %v163, %v1796
    %1798 = vmatpush.msra.mxu0 %v1797
    %v1799 = vand.u32 %v161, 4294901760
    %v1800 = vsub.f32 %v161, %v1799
    %1801 = vmatpush.msra.mxu0 %v1800
    %v1802 = vand.u32 %v159, 4294901760
    %v1803 = vsub.f32 %v159, %v1802
    %1804 = vmatpush.msra.mxu0 %v1803
    %v1805 = vand.u32 %v157, 4294901760
    %v1806 = vsub.f32 %v157, %v1805
    %1807 = vmatpush.msra.mxu0 %v1806
    %v1808 = vand.u32 %v155, 4294901760
    %v1809 = vsub.f32 %v155, %v1808
    %1810 = vmatpush.msra.mxu0 %v1809
    %v1811 = vand.u32 %v153, 4294901760
    %v1812 = vsub.f32 %v153, %v1811
    %1813 = vmatpush.msra.mxu0 %v1812
    %v1814 = vand.u32 %v151, 4294901760
    %v1815 = vsub.f32 %v151, %v1814
    %1816 = vmatpush.msra.mxu0 %v1815
    %v1817 = vand.u32 %v149, 4294901760
    %v1818 = vsub.f32 %v149, %v1817
    %1819 = vmatpush.msra.mxu0 %v1818
    %v1820 = vand.u32 %v147, 4294901760
    %v1821 = vsub.f32 %v147, %v1820
    %1822 = vmatpush.msra.mxu0 %v1821
    %v1823 = vand.u32 %v145, 4294901760
    %v1824 = vsub.f32 %v145, %v1823
    %1825 = vmatpush.msra.mxu0 %v1824
    %v1826 = vand.u32 %v132, 4294901760
    %v1827 = vsub.f32 %v132, %v1826
    %1828 = vmatmul.f32.gmra.mxu0 %v1827
    %v1829 = vpop.f32.mrf.mxu0
    %v1830 = vadd.f32 %v1776, %v1829
    %1831 = vdwg.mxu0
    %v1832 = vand.u32 %v175, 4294901760
    %1833 = vmatpush.msra.mxu0 %v1832
    %v1834 = vand.u32 %v173, 4294901760
    %1835 = vmatpush.msra.mxu0 %v1834
    %v1836 = vand.u32 %v171, 4294901760
    %1837 = vmatpush.msra.mxu0 %v1836
    %v1838 = vand.u32 %v169, 4294901760
    %1839 = vmatpush.msra.mxu0 %v1838
    %v1840 = vand.u32 %v167, 4294901760
    %1841 = vmatpush.msra.mxu0 %v1840
    %v1842 = vand.u32 %v165, 4294901760
    %1843 = vmatpush.msra.mxu0 %v1842
    %v1844 = vand.u32 %v163, 4294901760
    %1845 = vmatpush.msra.mxu0 %v1844
    %v1846 = vand.u32 %v161, 4294901760
    %1847 = vmatpush.msra.mxu0 %v1846
    %v1848 = vand.u32 %v159, 4294901760
    %1849 = vmatpush.msra.mxu0 %v1848
    %v1850 = vand.u32 %v157, 4294901760
    %1851 = vmatpush.msra.mxu0 %v1850
    %v1852 = vand.u32 %v155, 4294901760
    %1853 = vmatpush.msra.mxu0 %v1852
    %v1854 = vand.u32 %v153, 4294901760
    %1855 = vmatpush.msra.mxu0 %v1854
    %v1856 = vand.u32 %v151, 4294901760
    %1857 = vmatpush.msra.mxu0 %v1856
    %v1858 = vand.u32 %v149, 4294901760
    %1859 = vmatpush.msra.mxu0 %v1858
    %v1860 = vand.u32 %v147, 4294901760
    %1861 = vmatpush.msra.mxu0 %v1860
    %v1862 = vand.u32 %v145, 4294901760
    %1863 = vmatpush.msra.mxu0 %v1862
    %v1864 = vand.u32 %v132, 4294901760
    %v1865 = vsub.f32 %v132, %v1864
    %v1866 = vand.u32 %v1865, 4294901760
    %1867 = vmatmul.f32.gmra.mxu0 %v1866
    %v1868 = vpop.f32.mrf.mxu0
    %v1869 = vadd.f32 %v1830, %v1868
    %1870 = vdwg.mxu0
    %v1871 = vand.u32 %v175, 4294901760
    %v1872 = vsub.f32 %v175, %v1871
    %v1873 = vand.u32 %v1872, 4294901760
    %1874 = vmatpush.msra.mxu0 %v1873
    %v1875 = vand.u32 %v173, 4294901760
    %v1876 = vsub.f32 %v173, %v1875
    %v1877 = vand.u32 %v1876, 4294901760
    %1878 = vmatpush.msra.mxu0 %v1877
    %v1879 = vand.u32 %v171, 4294901760
    %v1880 = vsub.f32 %v171, %v1879
    %v1881 = vand.u32 %v1880, 4294901760
    %1882 = vmatpush.msra.mxu0 %v1881
    %v1883 = vand.u32 %v169, 4294901760
    %v1884 = vsub.f32 %v169, %v1883
    %v1885 = vand.u32 %v1884, 4294901760
    %1886 = vmatpush.msra.mxu0 %v1885
    %v1887 = vand.u32 %v167, 4294901760
    %v1888 = vsub.f32 %v167, %v1887
    %v1889 = vand.u32 %v1888, 4294901760
    %1890 = vmatpush.msra.mxu0 %v1889
    %v1891 = vand.u32 %v165, 4294901760
    %v1892 = vsub.f32 %v165, %v1891
    %v1893 = vand.u32 %v1892, 4294901760
    %1894 = vmatpush.msra.mxu0 %v1893
    %v1895 = vand.u32 %v163, 4294901760
    %v1896 = vsub.f32 %v163, %v1895
    %v1897 = vand.u32 %v1896, 4294901760
    %1898 = vmatpush.msra.mxu0 %v1897
    %v1899 = vand.u32 %v161, 4294901760
    %v1900 = vsub.f32 %v161, %v1899
    %v1901 = vand.u32 %v1900, 4294901760
    %1902 = vmatpush.msra.mxu0 %v1901
    %v1903 = vand.u32 %v159, 4294901760
    %v1904 = vsub.f32 %v159, %v1903
    %v1905 = vand.u32 %v1904, 4294901760
    %1906 = vmatpush.msra.mxu0 %v1905
    %v1907 = vand.u32 %v157, 4294901760
    %v1908 = vsub.f32 %v157, %v1907
    %v1909 = vand.u32 %v1908, 4294901760
    %1910 = vmatpush.msra.mxu0 %v1909
    %v1911 = vand.u32 %v155, 4294901760
    %v1912 = vsub.f32 %v155, %v1911
    %v1913 = vand.u32 %v1912, 4294901760
    %1914 = vmatpush.msra.mxu0 %v1913
    %v1915 = vand.u32 %v153, 4294901760
    %v1916 = vsub.f32 %v153, %v1915
    %v1917 = vand.u32 %v1916, 4294901760
    %1918 = vmatpush.msra.mxu0 %v1917
    %v1919 = vand.u32 %v151, 4294901760
    %v1920 = vsub.f32 %v151, %v1919
    %v1921 = vand.u32 %v1920, 4294901760
    %1922 = vmatpush.msra.mxu0 %v1921
    %v1923 = vand.u32 %v149, 4294901760
    %v1924 = vsub.f32 %v149, %v1923
    %v1925 = vand.u32 %v1924, 4294901760
    %1926 = vmatpush.msra.mxu0 %v1925
    %v1927 = vand.u32 %v147, 4294901760
    %v1928 = vsub.f32 %v147, %v1927
    %v1929 = vand.u32 %v1928, 4294901760
    %1930 = vmatpush.msra.mxu0 %v1929
    %v1931 = vand.u32 %v145, 4294901760
    %v1932 = vsub.f32 %v145, %v1931
    %v1933 = vand.u32 %v1932, 4294901760
    %1934 = vmatpush.msra.mxu0 %v1933
    %v1935 = vand.u32 %v132, 4294901760
    %1936 = vmatmul.f32.gmra.mxu0 %v1935
    %v1937 = vpop.f32.mrf.mxu0
    %v1938 = vadd.f32 %v1869, %v1937
    %1939 = vdwg.mxu0
    %v1940 = vand.u32 %v175, 4294901760
    %1941 = vmatpush.msra.mxu0 %v1940
    %v1942 = vand.u32 %v173, 4294901760
    %1943 = vmatpush.msra.mxu0 %v1942
    %v1944 = vand.u32 %v171, 4294901760
    %1945 = vmatpush.msra.mxu0 %v1944
    %v1946 = vand.u32 %v169, 4294901760
    %1947 = vmatpush.msra.mxu0 %v1946
    %v1948 = vand.u32 %v167, 4294901760
    %1949 = vmatpush.msra.mxu0 %v1948
    %v1950 = vand.u32 %v165, 4294901760
    %1951 = vmatpush.msra.mxu0 %v1950
    %v1952 = vand.u32 %v163, 4294901760
    %1953 = vmatpush.msra.mxu0 %v1952
    %v1954 = vand.u32 %v161, 4294901760
    %1955 = vmatpush.msra.mxu0 %v1954
    %v1956 = vand.u32 %v159, 4294901760
    %1957 = vmatpush.msra.mxu0 %v1956
    %v1958 = vand.u32 %v157, 4294901760
    %1959 = vmatpush.msra.mxu0 %v1958
    %v1960 = vand.u32 %v155, 4294901760
    %1961 = vmatpush.msra.mxu0 %v1960
    %v1962 = vand.u32 %v153, 4294901760
    %1963 = vmatpush.msra.mxu0 %v1962
    %v1964 = vand.u32 %v151, 4294901760
    %1965 = vmatpush.msra.mxu0 %v1964
    %v1966 = vand.u32 %v149, 4294901760
    %1967 = vmatpush.msra.mxu0 %v1966
    %v1968 = vand.u32 %v147, 4294901760
    %1969 = vmatpush.msra.mxu0 %v1968
    %v1970 = vand.u32 %v145, 4294901760
    %1971 = vmatpush.msra.mxu0 %v1970
    %v1972 = vand.u32 %v132, 4294901760
    %1973 = vmatmul.f32.gmra.mxu0 %v1972
    %v1974 = vpop.f32.mrf.mxu0
    %v1975 = vadd.f32 %v1938, %v1974
    %1976 = vdwg.mxu0
    %v1977 = vand.u32 %v207, 4294901760
    %1978 = vmatpush.msra.mxu0 %v1977
    %v1979 = vand.u32 %v205, 4294901760
    %1980 = vmatpush.msra.mxu0 %v1979
    %v1981 = vand.u32 %v203, 4294901760
    %1982 = vmatpush.msra.mxu0 %v1981
    %v1983 = vand.u32 %v201, 4294901760
    %1984 = vmatpush.msra.mxu0 %v1983
    %v1985 = vand.u32 %v199, 4294901760
    %1986 = vmatpush.msra.mxu0 %v1985
    %v1987 = vand.u32 %v197, 4294901760
    %1988 = vmatpush.msra.mxu0 %v1987
    %v1989 = vand.u32 %v195, 4294901760
    %1990 = vmatpush.msra.mxu0 %v1989
    %v1991 = vand.u32 %v193, 4294901760
    %1992 = vmatpush.msra.mxu0 %v1991
    %v1993 = vand.u32 %v191, 4294901760
    %1994 = vmatpush.msra.mxu0 %v1993
    %v1995 = vand.u32 %v189, 4294901760
    %1996 = vmatpush.msra.mxu0 %v1995
    %v1997 = vand.u32 %v187, 4294901760
    %1998 = vmatpush.msra.mxu0 %v1997
    %v1999 = vand.u32 %v185, 4294901760
    %2000 = vmatpush.msra.mxu0 %v1999
    %v2001 = vand.u32 %v183, 4294901760
    %2002 = vmatpush.msra.mxu0 %v2001
    %v2003 = vand.u32 %v181, 4294901760
    %2004 = vmatpush.msra.mxu0 %v2003
    %v2005 = vand.u32 %v179, 4294901760
    %2006 = vmatpush.msra.mxu0 %v2005
    %v2007 = vand.u32 %v177, 4294901760
    %2008 = vmatpush.msra.mxu0 %v2007
    %v2009 = vand.u32 %v133, 4294901760
    %v2010 = vsub.f32 %v133, %v2009
    %v2011 = vand.u32 %v2010, 4294901760
    %v2012 = vsub.f32 %v2010, %v2011
    %v2013 = vand.u32 %v2012, 4294901760
    %2014 = vmatmul.f32.gmra.mxu0 %v2013
    %v2015 = vpop.f32.mrf.mxu0
    %v2016 = vadd.f32 %v1975, %v2015
    %2017 = vdwg.mxu0
    %v2018 = vand.u32 %v207, 4294901760
    %v2019 = vsub.f32 %v207, %v2018
    %v2020 = vand.u32 %v2019, 4294901760
    %v2021 = vsub.f32 %v2019, %v2020
    %v2022 = vand.u32 %v2021, 4294901760
    %2023 = vmatpush.msra.mxu0 %v2022
    %v2024 = vand.u32 %v205, 4294901760
    %v2025 = vsub.f32 %v205, %v2024
    %v2026 = vand.u32 %v2025, 4294901760
    %v2027 = vsub.f32 %v2025, %v2026
    %v2028 = vand.u32 %v2027, 4294901760
    %2029 = vmatpush.msra.mxu0 %v2028
    %v2030 = vand.u32 %v203, 4294901760
    %v2031 = vsub.f32 %v203, %v2030
    %v2032 = vand.u32 %v2031, 4294901760
    %v2033 = vsub.f32 %v2031, %v2032
    %v2034 = vand.u32 %v2033, 4294901760
    %2035 = vmatpush.msra.mxu0 %v2034
    %v2036 = vand.u32 %v201, 4294901760
    %v2037 = vsub.f32 %v201, %v2036
    %v2038 = vand.u32 %v2037, 4294901760
    %v2039 = vsub.f32 %v2037, %v2038
    %v2040 = vand.u32 %v2039, 4294901760
    %2041 = vmatpush.msra.mxu0 %v2040
    %v2042 = vand.u32 %v199, 4294901760
    %v2043 = vsub.f32 %v199, %v2042
    %v2044 = vand.u32 %v2043, 4294901760
    %v2045 = vsub.f32 %v2043, %v2044
    %v2046 = vand.u32 %v2045, 4294901760
    %2047 = vmatpush.msra.mxu0 %v2046
    %v2048 = vand.u32 %v197, 4294901760
    %v2049 = vsub.f32 %v197, %v2048
    %v2050 = vand.u32 %v2049, 4294901760
    %v2051 = vsub.f32 %v2049, %v2050
    %v2052 = vand.u32 %v2051, 4294901760
    %2053 = vmatpush.msra.mxu0 %v2052
    %v2054 = vand.u32 %v195, 4294901760
    %v2055 = vsub.f32 %v195, %v2054
    %v2056 = vand.u32 %v2055, 4294901760
    %v2057 = vsub.f32 %v2055, %v2056
    %v2058 = vand.u32 %v2057, 4294901760
    %2059 = vmatpush.msra.mxu0 %v2058
    %v2060 = vand.u32 %v193, 4294901760
    %v2061 = vsub.f32 %v193, %v2060
    %v2062 = vand.u32 %v2061, 4294901760
    %v2063 = vsub.f32 %v2061, %v2062
    %v2064 = vand.u32 %v2063, 4294901760
    %2065 = vmatpush.msra.mxu0 %v2064
    %v2066 = vand.u32 %v191, 4294901760
    %v2067 = vsub.f32 %v191, %v2066
    %v2068 = vand.u32 %v2067, 4294901760
    %v2069 = vsub.f32 %v2067, %v2068
    %v2070 = vand.u32 %v2069, 4294901760
    %2071 = vmatpush.msra.mxu0 %v2070
    %v2072 = vand.u32 %v189, 4294901760
    %v2073 = vsub.f32 %v189, %v2072
    %v2074 = vand.u32 %v2073, 4294901760
    %v2075 = vsub.f32 %v2073, %v2074
    %v2076 = vand.u32 %v2075, 4294901760
    %2077 = vmatpush.msra.mxu0 %v2076
    %v2078 = vand.u32 %v187, 4294901760
    %v2079 = vsub.f32 %v187, %v2078
    %v2080 = vand.u32 %v2079, 4294901760
    %v2081 = vsub.f32 %v2079, %v2080
    %v2082 = vand.u32 %v2081, 4294901760
    %2083 = vmatpush.msra.mxu0 %v2082
    %v2084 = vand.u32 %v185, 4294901760
    %v2085 = vsub.f32 %v185, %v2084
    %v2086 = vand.u32 %v2085, 4294901760
    %v2087 = vsub.f32 %v2085, %v2086
    %v2088 = vand.u32 %v2087, 4294901760
    %2089 = vmatpush.msra.mxu0 %v2088
    %v2090 = vand.u32 %v183, 4294901760
    %v2091 = vsub.f32 %v183, %v2090
    %v2092 = vand.u32 %v2091, 4294901760
    %v2093 = vsub.f32 %v2091, %v2092
    %v2094 = vand.u32 %v2093, 4294901760
    %2095 = vmatpush.msra.mxu0 %v2094
    %v2096 = vand.u32 %v181, 4294901760
    %v2097 = vsub.f32 %v181, %v2096
    %v2098 = vand.u32 %v2097, 4294901760
    %v2099 = vsub.f32 %v2097, %v2098
    %v2100 = vand.u32 %v2099, 4294901760
    %2101 = vmatpush.msra.mxu0 %v2100
    %v2102 = vand.u32 %v179, 4294901760
    %v2103 = vsub.f32 %v179, %v2102
    %v2104 = vand.u32 %v2103, 4294901760
    %v2105 = vsub.f32 %v2103, %v2104
    %v2106 = vand.u32 %v2105, 4294901760
    %2107 = vmatpush.msra.mxu0 %v2106
    %v2108 = vand.u32 %v177, 4294901760
    %v2109 = vsub.f32 %v177, %v2108
    %v2110 = vand.u32 %v2109, 4294901760
    %v2111 = vsub.f32 %v2109, %v2110
    %v2112 = vand.u32 %v2111, 4294901760
    %2113 = vmatpush.msra.mxu0 %v2112
    %v2114 = vand.u32 %v133, 4294901760
    %2115 = vmatmul.f32.gmra.mxu0 %v2114
    %v2116 = vpop.f32.mrf.mxu0
    %v2117 = vadd.f32 %v2016, %v2116
    %2118 = vdwg.mxu0
    %v2119 = vand.u32 %v207, 4294901760
    %v2120 = vsub.f32 %v207, %v2119
    %2121 = vmatpush.msra.mxu0 %v2120
    %v2122 = vand.u32 %v205, 4294901760
    %v2123 = vsub.f32 %v205, %v2122
    %2124 = vmatpush.msra.mxu0 %v2123
    %v2125 = vand.u32 %v203, 4294901760
    %v2126 = vsub.f32 %v203, %v2125
    %2127 = vmatpush.msra.mxu0 %v2126
    %v2128 = vand.u32 %v201, 4294901760
    %v2129 = vsub.f32 %v201, %v2128
    %2130 = vmatpush.msra.mxu0 %v2129
    %v2131 = vand.u32 %v199, 4294901760
    %v2132 = vsub.f32 %v199, %v2131
    %2133 = vmatpush.msra.mxu0 %v2132
    %v2134 = vand.u32 %v197, 4294901760
    %v2135 = vsub.f32 %v197, %v2134
    %2136 = vmatpush.msra.mxu0 %v2135
    %v2137 = vand.u32 %v195, 4294901760
    %v2138 = vsub.f32 %v195, %v2137
    %2139 = vmatpush.msra.mxu0 %v2138
    %v2140 = vand.u32 %v193, 4294901760
    %v2141 = vsub.f32 %v193, %v2140
    %2142 = vmatpush.msra.mxu0 %v2141
    %v2143 = vand.u32 %v191, 4294901760
    %v2144 = vsub.f32 %v191, %v2143
    %2145 = vmatpush.msra.mxu0 %v2144
    %v2146 = vand.u32 %v189, 4294901760
    %v2147 = vsub.f32 %v189, %v2146
    %2148 = vmatpush.msra.mxu0 %v2147
    %v2149 = vand.u32 %v187, 4294901760
    %v2150 = vsub.f32 %v187, %v2149
    %2151 = vmatpush.msra.mxu0 %v2150
    %v2152 = vand.u32 %v185, 4294901760
    %v2153 = vsub.f32 %v185, %v2152
    %2154 = vmatpush.msra.mxu0 %v2153
    %v2155 = vand.u32 %v183, 4294901760
    %v2156 = vsub.f32 %v183, %v2155
    %2157 = vmatpush.msra.mxu0 %v2156
    %v2158 = vand.u32 %v181, 4294901760
    %v2159 = vsub.f32 %v181, %v2158
    %2160 = vmatpush.msra.mxu0 %v2159
    %v2161 = vand.u32 %v179, 4294901760
    %v2162 = vsub.f32 %v179, %v2161
    %2163 = vmatpush.msra.mxu0 %v2162
    %v2164 = vand.u32 %v177, 4294901760
    %v2165 = vsub.f32 %v177, %v2164
    %2166 = vmatpush.msra.mxu0 %v2165
    %v2167 = vand.u32 %v133, 4294901760
    %v2168 = vsub.f32 %v133, %v2167
    %2169 = vmatmul.f32.gmra.mxu0 %v2168
    %v2170 = vpop.f32.mrf.mxu0
    %v2171 = vadd.f32 %v2117, %v2170
    %2172 = vdwg.mxu0
    %v2173 = vand.u32 %v207, 4294901760
    %2174 = vmatpush.msra.mxu0 %v2173
    %v2175 = vand.u32 %v205, 4294901760
    %2176 = vmatpush.msra.mxu0 %v2175
    %v2177 = vand.u32 %v203, 4294901760
    %2178 = vmatpush.msra.mxu0 %v2177
    %v2179 = vand.u32 %v201, 4294901760
    %2180 = vmatpush.msra.mxu0 %v2179
    %v2181 = vand.u32 %v199, 4294901760
    %2182 = vmatpush.msra.mxu0 %v2181
    %v2183 = vand.u32 %v197, 4294901760
    %2184 = vmatpush.msra.mxu0 %v2183
    %v2185 = vand.u32 %v195, 4294901760
    %2186 = vmatpush.msra.mxu0 %v2185
    %v2187 = vand.u32 %v193, 4294901760
    %2188 = vmatpush.msra.mxu0 %v2187
    %v2189 = vand.u32 %v191, 4294901760
    %2190 = vmatpush.msra.mxu0 %v2189
    %v2191 = vand.u32 %v189, 4294901760
    %2192 = vmatpush.msra.mxu0 %v2191
    %v2193 = vand.u32 %v187, 4294901760
    %2194 = vmatpush.msra.mxu0 %v2193
    %v2195 = vand.u32 %v185, 4294901760
    %2196 = vmatpush.msra.mxu0 %v2195
    %v2197 = vand.u32 %v183, 4294901760
    %2198 = vmatpush.msra.mxu0 %v2197
    %v2199 = vand.u32 %v181, 4294901760
    %2200 = vmatpush.msra.mxu0 %v2199
    %v2201 = vand.u32 %v179, 4294901760
    %2202 = vmatpush.msra.mxu0 %v2201
    %v2203 = vand.u32 %v177, 4294901760
    %2204 = vmatpush.msra.mxu0 %v2203
    %v2205 = vand.u32 %v133, 4294901760
    %v2206 = vsub.f32 %v133, %v2205
    %v2207 = vand.u32 %v2206, 4294901760
    %2208 = vmatmul.f32.gmra.mxu0 %v2207
    %v2209 = vpop.f32.mrf.mxu0
    %v2210 = vadd.f32 %v2171, %v2209
    %2211 = vdwg.mxu0
    %v2212 = vand.u32 %v207, 4294901760
    %v2213 = vsub.f32 %v207, %v2212
    %v2214 = vand.u32 %v2213, 4294901760
    %2215 = vmatpush.msra.mxu0 %v2214
    %v2216 = vand.u32 %v205, 4294901760
    %v2217 = vsub.f32 %v205, %v2216
    %v2218 = vand.u32 %v2217, 4294901760
    %2219 = vmatpush.msra.mxu0 %v2218
    %v2220 = vand.u32 %v203, 4294901760
    %v2221 = vsub.f32 %v203, %v2220
    %v2222 = vand.u32 %v2221, 4294901760
    %2223 = vmatpush.msra.mxu0 %v2222
    %v2224 = vand.u32 %v201, 4294901760
    %v2225 = vsub.f32 %v201, %v2224
    %v2226 = vand.u32 %v2225, 4294901760
    %2227 = vmatpush.msra.mxu0 %v2226
    %v2228 = vand.u32 %v199, 4294901760
    %v2229 = vsub.f32 %v199, %v2228
    %v2230 = vand.u32 %v2229, 4294901760
    %2231 = vmatpush.msra.mxu0 %v2230
    %v2232 = vand.u32 %v197, 4294901760
    %v2233 = vsub.f32 %v197, %v2232
    %v2234 = vand.u32 %v2233, 4294901760
    %2235 = vmatpush.msra.mxu0 %v2234
    %v2236 = vand.u32 %v195, 4294901760
    %v2237 = vsub.f32 %v195, %v2236
    %v2238 = vand.u32 %v2237, 4294901760
    %2239 = vmatpush.msra.mxu0 %v2238
    %v2240 = vand.u32 %v193, 4294901760
    %v2241 = vsub.f32 %v193, %v2240
    %v2242 = vand.u32 %v2241, 4294901760
    %2243 = vmatpush.msra.mxu0 %v2242
    %v2244 = vand.u32 %v191, 4294901760
    %v2245 = vsub.f32 %v191, %v2244
    %v2246 = vand.u32 %v2245, 4294901760
    %2247 = vmatpush.msra.mxu0 %v2246
    %v2248 = vand.u32 %v189, 4294901760
    %v2249 = vsub.f32 %v189, %v2248
    %v2250 = vand.u32 %v2249, 4294901760
    %2251 = vmatpush.msra.mxu0 %v2250
    %v2252 = vand.u32 %v187, 4294901760
    %v2253 = vsub.f32 %v187, %v2252
    %v2254 = vand.u32 %v2253, 4294901760
    %2255 = vmatpush.msra.mxu0 %v2254
    %v2256 = vand.u32 %v185, 4294901760
    %v2257 = vsub.f32 %v185, %v2256
    %v2258 = vand.u32 %v2257, 4294901760
    %2259 = vmatpush.msra.mxu0 %v2258
    %v2260 = vand.u32 %v183, 4294901760
    %v2261 = vsub.f32 %v183, %v2260
    %v2262 = vand.u32 %v2261, 4294901760
    %2263 = vmatpush.msra.mxu0 %v2262
    %v2264 = vand.u32 %v181, 4294901760
    %v2265 = vsub.f32 %v181, %v2264
    %v2266 = vand.u32 %v2265, 4294901760
    %2267 = vmatpush.msra.mxu0 %v2266
    %v2268 = vand.u32 %v179, 4294901760
    %v2269 = vsub.f32 %v179, %v2268
    %v2270 = vand.u32 %v2269, 4294901760
    %2271 = vmatpush.msra.mxu0 %v2270
    %v2272 = vand.u32 %v177, 4294901760
    %v2273 = vsub.f32 %v177, %v2272
    %v2274 = vand.u32 %v2273, 4294901760
    %2275 = vmatpush.msra.mxu0 %v2274
    %v2276 = vand.u32 %v133, 4294901760
    %2277 = vmatmul.f32.gmra.mxu0 %v2276
    %v2278 = vpop.f32.mrf.mxu0
    %v2279 = vadd.f32 %v2210, %v2278
    %2280 = vdwg.mxu0
    %v2281 = vand.u32 %v207, 4294901760
    %2282 = vmatpush.msra.mxu0 %v2281
    %v2283 = vand.u32 %v205, 4294901760
    %2284 = vmatpush.msra.mxu0 %v2283
    %v2285 = vand.u32 %v203, 4294901760
    %2286 = vmatpush.msra.mxu0 %v2285
    %v2287 = vand.u32 %v201, 4294901760
    %2288 = vmatpush.msra.mxu0 %v2287
    %v2289 = vand.u32 %v199, 4294901760
    %2290 = vmatpush.msra.mxu0 %v2289
    %v2291 = vand.u32 %v197, 4294901760
    %2292 = vmatpush.msra.mxu0 %v2291
    %v2293 = vand.u32 %v195, 4294901760
    %2294 = vmatpush.msra.mxu0 %v2293
    %v2295 = vand.u32 %v193, 4294901760
    %2296 = vmatpush.msra.mxu0 %v2295
    %v2297 = vand.u32 %v191, 4294901760
    %2298 = vmatpush.msra.mxu0 %v2297
    %v2299 = vand.u32 %v189, 4294901760
    %2300 = vmatpush.msra.mxu0 %v2299
    %v2301 = vand.u32 %v187, 4294901760
    %2302 = vmatpush.msra.mxu0 %v2301
    %v2303 = vand.u32 %v185, 4294901760
    %2304 = vmatpush.msra.mxu0 %v2303
    %v2305 = vand.u32 %v183, 4294901760
    %2306 = vmatpush.msra.mxu0 %v2305
    %v2307 = vand.u32 %v181, 4294901760
    %2308 = vmatpush.msra.mxu0 %v2307
    %v2309 = vand.u32 %v179, 4294901760
    %2310 = vmatpush.msra.mxu0 %v2309
    %v2311 = vand.u32 %v177, 4294901760
    %2312 = vmatpush.msra.mxu0 %v2311
    %v2313 = vand.u32 %v133, 4294901760
    %2314 = vmatmul.f32.gmra.mxu0 %v2313
    %v2315 = vpop.f32.mrf.mxu0
    %v2316 = vadd.f32 %v2279, %v2315
    %2317 = vdwg.mxu0
    %v2318 = vand.u32 %v239, 4294901760
    %2319 = vmatpush.msra.mxu0 %v2318
    %v2320 = vand.u32 %v237, 4294901760
    %2321 = vmatpush.msra.mxu0 %v2320
    %v2322 = vand.u32 %v235, 4294901760
    %2323 = vmatpush.msra.mxu0 %v2322
    %v2324 = vand.u32 %v233, 4294901760
    %2325 = vmatpush.msra.mxu0 %v2324
    %v2326 = vand.u32 %v231, 4294901760
    %2327 = vmatpush.msra.mxu0 %v2326
    %v2328 = vand.u32 %v229, 4294901760
    %2329 = vmatpush.msra.mxu0 %v2328
    %v2330 = vand.u32 %v227, 4294901760
    %2331 = vmatpush.msra.mxu0 %v2330
    %v2332 = vand.u32 %v225, 4294901760
    %2333 = vmatpush.msra.mxu0 %v2332
    %v2334 = vand.u32 %v223, 4294901760
    %2335 = vmatpush.msra.mxu0 %v2334
    %v2336 = vand.u32 %v221, 4294901760
    %2337 = vmatpush.msra.mxu0 %v2336
    %v2338 = vand.u32 %v219, 4294901760
    %2339 = vmatpush.msra.mxu0 %v2338
    %v2340 = vand.u32 %v217, 4294901760
    %2341 = vmatpush.msra.mxu0 %v2340
    %v2342 = vand.u32 %v215, 4294901760
    %2343 = vmatpush.msra.mxu0 %v2342
    %v2344 = vand.u32 %v213, 4294901760
    %2345 = vmatpush.msra.mxu0 %v2344
    %v2346 = vand.u32 %v211, 4294901760
    %2347 = vmatpush.msra.mxu0 %v2346
    %v2348 = vand.u32 %v209, 4294901760
    %2349 = vmatpush.msra.mxu0 %v2348
    %v2350 = vand.u32 %v140, 4294901760
    %v2351 = vsub.f32 %v140, %v2350
    %v2352 = vand.u32 %v2351, 4294901760
    %v2353 = vsub.f32 %v2351, %v2352
    %v2354 = vand.u32 %v2353, 4294901760
    %2355 = vmatmul.f32.gmra.mxu0 %v2354
    %v2356 = vpop.f32.mrf.mxu0
    %v2357 = vadd.f32 %v2316, %v2356
    %2358 = vdwg.mxu0
    %v2359 = vand.u32 %v239, 4294901760
    %v2360 = vsub.f32 %v239, %v2359
    %v2361 = vand.u32 %v2360, 4294901760
    %v2362 = vsub.f32 %v2360, %v2361
    %v2363 = vand.u32 %v2362, 4294901760
    %2364 = vmatpush.msra.mxu0 %v2363
    %v2365 = vand.u32 %v237, 4294901760
    %v2366 = vsub.f32 %v237, %v2365
    %v2367 = vand.u32 %v2366, 4294901760
    %v2368 = vsub.f32 %v2366, %v2367
    %v2369 = vand.u32 %v2368, 4294901760
    %2370 = vmatpush.msra.mxu0 %v2369
    %v2371 = vand.u32 %v235, 4294901760
    %v2372 = vsub.f32 %v235, %v2371
    %v2373 = vand.u32 %v2372, 4294901760
    %v2374 = vsub.f32 %v2372, %v2373
    %v2375 = vand.u32 %v2374, 4294901760
    %2376 = vmatpush.msra.mxu0 %v2375
    %v2377 = vand.u32 %v233, 4294901760
    %v2378 = vsub.f32 %v233, %v2377
    %v2379 = vand.u32 %v2378, 4294901760
    %v2380 = vsub.f32 %v2378, %v2379
    %v2381 = vand.u32 %v2380, 4294901760
    %2382 = vmatpush.msra.mxu0 %v2381
    %v2383 = vand.u32 %v231, 4294901760
    %v2384 = vsub.f32 %v231, %v2383
    %v2385 = vand.u32 %v2384, 4294901760
    %v2386 = vsub.f32 %v2384, %v2385
    %v2387 = vand.u32 %v2386, 4294901760
    %2388 = vmatpush.msra.mxu0 %v2387
    %v2389 = vand.u32 %v229, 4294901760
    %v2390 = vsub.f32 %v229, %v2389
    %v2391 = vand.u32 %v2390, 4294901760
    %v2392 = vsub.f32 %v2390, %v2391
    %v2393 = vand.u32 %v2392, 4294901760
    %2394 = vmatpush.msra.mxu0 %v2393
    %v2395 = vand.u32 %v227, 4294901760
    %v2396 = vsub.f32 %v227, %v2395
    %v2397 = vand.u32 %v2396, 4294901760
    %v2398 = vsub.f32 %v2396, %v2397
    %v2399 = vand.u32 %v2398, 4294901760
    %2400 = vmatpush.msra.mxu0 %v2399
    %v2401 = vand.u32 %v225, 4294901760
    %v2402 = vsub.f32 %v225, %v2401
    %v2403 = vand.u32 %v2402, 4294901760
    %v2404 = vsub.f32 %v2402, %v2403
    %v2405 = vand.u32 %v2404, 4294901760
    %2406 = vmatpush.msra.mxu0 %v2405
    %v2407 = vand.u32 %v223, 4294901760
    %v2408 = vsub.f32 %v223, %v2407
    %v2409 = vand.u32 %v2408, 4294901760
    %v2410 = vsub.f32 %v2408, %v2409
    %v2411 = vand.u32 %v2410, 4294901760
    %2412 = vmatpush.msra.mxu0 %v2411
    %v2413 = vand.u32 %v221, 4294901760
    %v2414 = vsub.f32 %v221, %v2413
    %v2415 = vand.u32 %v2414, 4294901760
    %v2416 = vsub.f32 %v2414, %v2415
    %v2417 = vand.u32 %v2416, 4294901760
    %2418 = vmatpush.msra.mxu0 %v2417
    %v2419 = vand.u32 %v219, 4294901760
    %v2420 = vsub.f32 %v219, %v2419
    %v2421 = vand.u32 %v2420, 4294901760
    %v2422 = vsub.f32 %v2420, %v2421
    %v2423 = vand.u32 %v2422, 4294901760
    %2424 = vmatpush.msra.mxu0 %v2423
    %v2425 = vand.u32 %v217, 4294901760
    %v2426 = vsub.f32 %v217, %v2425
    %v2427 = vand.u32 %v2426, 4294901760
    %v2428 = vsub.f32 %v2426, %v2427
    %v2429 = vand.u32 %v2428, 4294901760
    %2430 = vmatpush.msra.mxu0 %v2429
    %v2431 = vand.u32 %v215, 4294901760
    %v2432 = vsub.f32 %v215, %v2431
    %v2433 = vand.u32 %v2432, 4294901760
    %v2434 = vsub.f32 %v2432, %v2433
    %v2435 = vand.u32 %v2434, 4294901760
    %2436 = vmatpush.msra.mxu0 %v2435
    %v2437 = vand.u32 %v213, 4294901760
    %v2438 = vsub.f32 %v213, %v2437
    %v2439 = vand.u32 %v2438, 4294901760
    %v2440 = vsub.f32 %v2438, %v2439
    %v2441 = vand.u32 %v2440, 4294901760
    %2442 = vmatpush.msra.mxu0 %v2441
    %v2443 = vand.u32 %v211, 4294901760
    %v2444 = vsub.f32 %v211, %v2443
    %v2445 = vand.u32 %v2444, 4294901760
    %v2446 = vsub.f32 %v2444, %v2445
    %v2447 = vand.u32 %v2446, 4294901760
    %2448 = vmatpush.msra.mxu0 %v2447
    %v2449 = vand.u32 %v209, 4294901760
    %v2450 = vsub.f32 %v209, %v2449
    %v2451 = vand.u32 %v2450, 4294901760
    %v2452 = vsub.f32 %v2450, %v2451
    %v2453 = vand.u32 %v2452, 4294901760
    %2454 = vmatpush.msra.mxu0 %v2453
    %v2455 = vand.u32 %v140, 4294901760
    %2456 = vmatmul.f32.gmra.mxu0 %v2455
    %v2457 = vpop.f32.mrf.mxu0
    %v2458 = vadd.f32 %v2357, %v2457
    %2459 = vdwg.mxu0
    %v2460 = vand.u32 %v239, 4294901760
    %v2461 = vsub.f32 %v239, %v2460
    %2462 = vmatpush.msra.mxu0 %v2461
    %v2463 = vand.u32 %v237, 4294901760
    %v2464 = vsub.f32 %v237, %v2463
    %2465 = vmatpush.msra.mxu0 %v2464
    %v2466 = vand.u32 %v235, 4294901760
    %v2467 = vsub.f32 %v235, %v2466
    %2468 = vmatpush.msra.mxu0 %v2467
    %v2469 = vand.u32 %v233, 4294901760
    %v2470 = vsub.f32 %v233, %v2469
    %2471 = vmatpush.msra.mxu0 %v2470
    %v2472 = vand.u32 %v231, 4294901760
    %v2473 = vsub.f32 %v231, %v2472
    %2474 = vmatpush.msra.mxu0 %v2473
    %v2475 = vand.u32 %v229, 4294901760
    %v2476 = vsub.f32 %v229, %v2475
    %2477 = vmatpush.msra.mxu0 %v2476
    %v2478 = vand.u32 %v227, 4294901760
    %v2479 = vsub.f32 %v227, %v2478
    %2480 = vmatpush.msra.mxu0 %v2479
    %v2481 = vand.u32 %v225, 4294901760
    %v2482 = vsub.f32 %v225, %v2481
    %2483 = vmatpush.msra.mxu0 %v2482
    %v2484 = vand.u32 %v223, 4294901760
    %v2485 = vsub.f32 %v223, %v2484
    %2486 = vmatpush.msra.mxu0 %v2485
    %v2487 = vand.u32 %v221, 4294901760
    %v2488 = vsub.f32 %v221, %v2487
    %2489 = vmatpush.msra.mxu0 %v2488
    %v2490 = vand.u32 %v219, 4294901760
    %v2491 = vsub.f32 %v219, %v2490
    %2492 = vmatpush.msra.mxu0 %v2491
    %v2493 = vand.u32 %v217, 4294901760
    %v2494 = vsub.f32 %v217, %v2493
    %2495 = vmatpush.msra.mxu0 %v2494
    %v2496 = vand.u32 %v215, 4294901760
    %v2497 = vsub.f32 %v215, %v2496
    %2498 = vmatpush.msra.mxu0 %v2497
    %v2499 = vand.u32 %v213, 4294901760
    %v2500 = vsub.f32 %v213, %v2499
    %2501 = vmatpush.msra.mxu0 %v2500
    %v2502 = vand.u32 %v211, 4294901760
    %v2503 = vsub.f32 %v211, %v2502
    %2504 = vmatpush.msra.mxu0 %v2503
    %v2505 = vand.u32 %v209, 4294901760
    %v2506 = vsub.f32 %v209, %v2505
    %2507 = vmatpush.msra.mxu0 %v2506
    %v2508 = vand.u32 %v140, 4294901760
    %v2509 = vsub.f32 %v140, %v2508
    %2510 = vmatmul.f32.gmra.mxu0 %v2509
    %v2511 = vpop.f32.mrf.mxu0
    %v2512 = vadd.f32 %v2458, %v2511
    %2513 = vdwg.mxu0
    %v2514 = vand.u32 %v239, 4294901760
    %2515 = vmatpush.msra.mxu0 %v2514
    %v2516 = vand.u32 %v237, 4294901760
    %2517 = vmatpush.msra.mxu0 %v2516
    %v2518 = vand.u32 %v235, 4294901760
    %2519 = vmatpush.msra.mxu0 %v2518
    %v2520 = vand.u32 %v233, 4294901760
    %2521 = vmatpush.msra.mxu0 %v2520
    %v2522 = vand.u32 %v231, 4294901760
    %2523 = vmatpush.msra.mxu0 %v2522
    %v2524 = vand.u32 %v229, 4294901760
    %2525 = vmatpush.msra.mxu0 %v2524
    %v2526 = vand.u32 %v227, 4294901760
    %2527 = vmatpush.msra.mxu0 %v2526
    %v2528 = vand.u32 %v225, 4294901760
    %2529 = vmatpush.msra.mxu0 %v2528
    %v2530 = vand.u32 %v223, 4294901760
    %2531 = vmatpush.msra.mxu0 %v2530
    %v2532 = vand.u32 %v221, 4294901760
    %2533 = vmatpush.msra.mxu0 %v2532
    %v2534 = vand.u32 %v219, 4294901760
    %2535 = vmatpush.msra.mxu0 %v2534
    %v2536 = vand.u32 %v217, 4294901760
    %2537 = vmatpush.msra.mxu0 %v2536
    %v2538 = vand.u32 %v215, 4294901760
    %2539 = vmatpush.msra.mxu0 %v2538
    %v2540 = vand.u32 %v213, 4294901760
    %2541 = vmatpush.msra.mxu0 %v2540
    %v2542 = vand.u32 %v211, 4294901760
    %2543 = vmatpush.msra.mxu0 %v2542
    %v2544 = vand.u32 %v209, 4294901760
    %2545 = vmatpush.msra.mxu0 %v2544
    %v2546 = vand.u32 %v140, 4294901760
    %v2547 = vsub.f32 %v140, %v2546
    %v2548 = vand.u32 %v2547, 4294901760
    %2549 = vmatmul.f32.gmra.mxu0 %v2548
    %v2550 = vpop.f32.mrf.mxu0
    %v2551 = vadd.f32 %v2512, %v2550
    %2552 = vdwg.mxu0
    %v2553 = vand.u32 %v239, 4294901760
    %v2554 = vsub.f32 %v239, %v2553
    %v2555 = vand.u32 %v2554, 4294901760
    %2556 = vmatpush.msra.mxu0 %v2555
    %v2557 = vand.u32 %v237, 4294901760
    %v2558 = vsub.f32 %v237, %v2557
    %v2559 = vand.u32 %v2558, 4294901760
    %2560 = vmatpush.msra.mxu0 %v2559
    %v2561 = vand.u32 %v235, 4294901760
    %v2562 = vsub.f32 %v235, %v2561
    %v2563 = vand.u32 %v2562, 4294901760
    %2564 = vmatpush.msra.mxu0 %v2563
    %v2565 = vand.u32 %v233, 4294901760
    %v2566 = vsub.f32 %v233, %v2565
    %v2567 = vand.u32 %v2566, 4294901760
    %2568 = vmatpush.msra.mxu0 %v2567
    %v2569 = vand.u32 %v231, 4294901760
    %v2570 = vsub.f32 %v231, %v2569
    %v2571 = vand.u32 %v2570, 4294901760
    %2572 = vmatpush.msra.mxu0 %v2571
    %v2573 = vand.u32 %v229, 4294901760
    %v2574 = vsub.f32 %v229, %v2573
    %v2575 = vand.u32 %v2574, 4294901760
    %2576 = vmatpush.msra.mxu0 %v2575
    %v2577 = vand.u32 %v227, 4294901760
    %v2578 = vsub.f32 %v227, %v2577
    %v2579 = vand.u32 %v2578, 4294901760
    %2580 = vmatpush.msra.mxu0 %v2579
    %v2581 = vand.u32 %v225, 4294901760
    %v2582 = vsub.f32 %v225, %v2581
    %v2583 = vand.u32 %v2582, 4294901760
    %2584 = vmatpush.msra.mxu0 %v2583
    %v2585 = vand.u32 %v223, 4294901760
    %v2586 = vsub.f32 %v223, %v2585
    %v2587 = vand.u32 %v2586, 4294901760
    %2588 = vmatpush.msra.mxu0 %v2587
    %v2589 = vand.u32 %v221, 4294901760
    %v2590 = vsub.f32 %v221, %v2589
    %v2591 = vand.u32 %v2590, 4294901760
    %2592 = vmatpush.msra.mxu0 %v2591
    %v2593 = vand.u32 %v219, 4294901760
    %v2594 = vsub.f32 %v219, %v2593
    %v2595 = vand.u32 %v2594, 4294901760
    %2596 = vmatpush.msra.mxu0 %v2595
    %v2597 = vand.u32 %v217, 4294901760
    %v2598 = vsub.f32 %v217, %v2597
    %v2599 = vand.u32 %v2598, 4294901760
    %2600 = vmatpush.msra.mxu0 %v2599
    %v2601 = vand.u32 %v215, 4294901760
    %v2602 = vsub.f32 %v215, %v2601
    %v2603 = vand.u32 %v2602, 4294901760
    %2604 = vmatpush.msra.mxu0 %v2603
    %v2605 = vand.u32 %v213, 4294901760
    %v2606 = vsub.f32 %v213, %v2605
    %v2607 = vand.u32 %v2606, 4294901760
    %2608 = vmatpush.msra.mxu0 %v2607
    %v2609 = vand.u32 %v211, 4294901760
    %v2610 = vsub.f32 %v211, %v2609
    %v2611 = vand.u32 %v2610, 4294901760
    %2612 = vmatpush.msra.mxu0 %v2611
    %v2613 = vand.u32 %v209, 4294901760
    %v2614 = vsub.f32 %v209, %v2613
    %v2615 = vand.u32 %v2614, 4294901760
    %2616 = vmatpush.msra.mxu0 %v2615
    %v2617 = vand.u32 %v140, 4294901760
    %2618 = vmatmul.f32.gmra.mxu0 %v2617
    %v2619 = vpop.f32.mrf.mxu0
    %v2620 = vadd.f32 %v2551, %v2619
    %2621 = vdwg.mxu0
    %v2622 = vand.u32 %v239, 4294901760
    %2623 = vmatpush.msra.mxu0 %v2622
    %v2624 = vand.u32 %v237, 4294901760
    %2625 = vmatpush.msra.mxu0 %v2624
    %v2626 = vand.u32 %v235, 4294901760
    %2627 = vmatpush.msra.mxu0 %v2626
    %v2628 = vand.u32 %v233, 4294901760
    %2629 = vmatpush.msra.mxu0 %v2628
    %v2630 = vand.u32 %v231, 4294901760
    %2631 = vmatpush.msra.mxu0 %v2630
    %v2632 = vand.u32 %v229, 4294901760
    %2633 = vmatpush.msra.mxu0 %v2632
    %v2634 = vand.u32 %v227, 4294901760
    %2635 = vmatpush.msra.mxu0 %v2634
    %v2636 = vand.u32 %v225, 4294901760
    %2637 = vmatpush.msra.mxu0 %v2636
    %v2638 = vand.u32 %v223, 4294901760
    %2639 = vmatpush.msra.mxu0 %v2638
    %v2640 = vand.u32 %v221, 4294901760
    %2641 = vmatpush.msra.mxu0 %v2640
    %v2642 = vand.u32 %v219, 4294901760
    %2643 = vmatpush.msra.mxu0 %v2642
    %v2644 = vand.u32 %v217, 4294901760
    %2645 = vmatpush.msra.mxu0 %v2644
    %v2646 = vand.u32 %v215, 4294901760
    %2647 = vmatpush.msra.mxu0 %v2646
    %v2648 = vand.u32 %v213, 4294901760
    %2649 = vmatpush.msra.mxu0 %v2648
    %v2650 = vand.u32 %v211, 4294901760
    %2651 = vmatpush.msra.mxu0 %v2650
    %v2652 = vand.u32 %v209, 4294901760
    %2653 = vmatpush.msra.mxu0 %v2652
    %v2654 = vand.u32 %v140, 4294901760
    %2655 = vmatmul.f32.gmra.mxu0 %v2654
    %v2656 = vpop.f32.mrf.mxu0
    %v2657 = vadd.f32 %v2620, %v2656
    %2658 = vdwg.mxu0
    %v2659 = vand.u32 %v271, 4294901760
    %2660 = vmatpush.msra.mxu0 %v2659
    %v2661 = vand.u32 %v269, 4294901760
    %2662 = vmatpush.msra.mxu0 %v2661
    %v2663 = vand.u32 %v267, 4294901760
    %2664 = vmatpush.msra.mxu0 %v2663
    %v2665 = vand.u32 %v265, 4294901760
    %2666 = vmatpush.msra.mxu0 %v2665
    %v2667 = vand.u32 %v263, 4294901760
    %2668 = vmatpush.msra.mxu0 %v2667
    %v2669 = vand.u32 %v261, 4294901760
    %2670 = vmatpush.msra.mxu0 %v2669
    %v2671 = vand.u32 %v259, 4294901760
    %2672 = vmatpush.msra.mxu0 %v2671
    %v2673 = vand.u32 %v257, 4294901760
    %2674 = vmatpush.msra.mxu0 %v2673
    %v2675 = vand.u32 %v255, 4294901760
    %2676 = vmatpush.msra.mxu0 %v2675
    %v2677 = vand.u32 %v253, 4294901760
    %2678 = vmatpush.msra.mxu0 %v2677
    %v2679 = vand.u32 %v251, 4294901760
    %2680 = vmatpush.msra.mxu0 %v2679
    %v2681 = vand.u32 %v249, 4294901760
    %2682 = vmatpush.msra.mxu0 %v2681
    %v2683 = vand.u32 %v247, 4294901760
    %2684 = vmatpush.msra.mxu0 %v2683
    %v2685 = vand.u32 %v245, 4294901760
    %2686 = vmatpush.msra.mxu0 %v2685
    %v2687 = vand.u32 %v243, 4294901760
    %2688 = vmatpush.msra.mxu0 %v2687
    %v2689 = vand.u32 %v241, 4294901760
    %2690 = vmatpush.msra.mxu0 %v2689
    %v2691 = vand.u32 %v141, 4294901760
    %v2692 = vsub.f32 %v141, %v2691
    %v2693 = vand.u32 %v2692, 4294901760
    %v2694 = vsub.f32 %v2692, %v2693
    %v2695 = vand.u32 %v2694, 4294901760
    %2696 = vmatmul.f32.gmra.mxu0 %v2695
    %v2697 = vpop.f32.mrf.mxu0
    %v2698 = vadd.f32 %v2657, %v2697
    %2699 = vdwg.mxu0
    %v2700 = vand.u32 %v271, 4294901760
    %v2701 = vsub.f32 %v271, %v2700
    %v2702 = vand.u32 %v2701, 4294901760
    %v2703 = vsub.f32 %v2701, %v2702
    %v2704 = vand.u32 %v2703, 4294901760
    %2705 = vmatpush.msra.mxu0 %v2704
    %v2706 = vand.u32 %v269, 4294901760
    %v2707 = vsub.f32 %v269, %v2706
    %v2708 = vand.u32 %v2707, 4294901760
    %v2709 = vsub.f32 %v2707, %v2708
    %v2710 = vand.u32 %v2709, 4294901760
    %2711 = vmatpush.msra.mxu0 %v2710
    %v2712 = vand.u32 %v267, 4294901760
    %v2713 = vsub.f32 %v267, %v2712
    %v2714 = vand.u32 %v2713, 4294901760
    %v2715 = vsub.f32 %v2713, %v2714
    %v2716 = vand.u32 %v2715, 4294901760
    %2717 = vmatpush.msra.mxu0 %v2716
    %v2718 = vand.u32 %v265, 4294901760
    %v2719 = vsub.f32 %v265, %v2718
    %v2720 = vand.u32 %v2719, 4294901760
    %v2721 = vsub.f32 %v2719, %v2720
    %v2722 = vand.u32 %v2721, 4294901760
    %2723 = vmatpush.msra.mxu0 %v2722
    %v2724 = vand.u32 %v263, 4294901760
    %v2725 = vsub.f32 %v263, %v2724
    %v2726 = vand.u32 %v2725, 4294901760
    %v2727 = vsub.f32 %v2725, %v2726
    %v2728 = vand.u32 %v2727, 4294901760
    %2729 = vmatpush.msra.mxu0 %v2728
    %v2730 = vand.u32 %v261, 4294901760
    %v2731 = vsub.f32 %v261, %v2730
    %v2732 = vand.u32 %v2731, 4294901760
    %v2733 = vsub.f32 %v2731, %v2732
    %v2734 = vand.u32 %v2733, 4294901760
    %2735 = vmatpush.msra.mxu0 %v2734
    %v2736 = vand.u32 %v259, 4294901760
    %v2737 = vsub.f32 %v259, %v2736
    %v2738 = vand.u32 %v2737, 4294901760
    %v2739 = vsub.f32 %v2737, %v2738
    %v2740 = vand.u32 %v2739, 4294901760
    %2741 = vmatpush.msra.mxu0 %v2740
    %v2742 = vand.u32 %v257, 4294901760
    %v2743 = vsub.f32 %v257, %v2742
    %v2744 = vand.u32 %v2743, 4294901760
    %v2745 = vsub.f32 %v2743, %v2744
    %v2746 = vand.u32 %v2745, 4294901760
    %2747 = vmatpush.msra.mxu0 %v2746
    %v2748 = vand.u32 %v255, 4294901760
    %v2749 = vsub.f32 %v255, %v2748
    %v2750 = vand.u32 %v2749, 4294901760
    %v2751 = vsub.f32 %v2749, %v2750
    %v2752 = vand.u32 %v2751, 4294901760
    %2753 = vmatpush.msra.mxu0 %v2752
    %v2754 = vand.u32 %v253, 4294901760
    %v2755 = vsub.f32 %v253, %v2754
    %v2756 = vand.u32 %v2755, 4294901760
    %v2757 = vsub.f32 %v2755, %v2756
    %v2758 = vand.u32 %v2757, 4294901760
    %2759 = vmatpush.msra.mxu0 %v2758
    %v2760 = vand.u32 %v251, 4294901760
    %v2761 = vsub.f32 %v251, %v2760
    %v2762 = vand.u32 %v2761, 4294901760
    %v2763 = vsub.f32 %v2761, %v2762
    %v2764 = vand.u32 %v2763, 4294901760
    %2765 = vmatpush.msra.mxu0 %v2764
    %v2766 = vand.u32 %v249, 4294901760
    %v2767 = vsub.f32 %v249, %v2766
    %v2768 = vand.u32 %v2767, 4294901760
    %v2769 = vsub.f32 %v2767, %v2768
    %v2770 = vand.u32 %v2769, 4294901760
    %2771 = vmatpush.msra.mxu0 %v2770
    %v2772 = vand.u32 %v247, 4294901760
    %v2773 = vsub.f32 %v247, %v2772
    %v2774 = vand.u32 %v2773, 4294901760
    %v2775 = vsub.f32 %v2773, %v2774
    %v2776 = vand.u32 %v2775, 4294901760
    %2777 = vmatpush.msra.mxu0 %v2776
    %v2778 = vand.u32 %v245, 4294901760
    %v2779 = vsub.f32 %v245, %v2778
    %v2780 = vand.u32 %v2779, 4294901760
    %v2781 = vsub.f32 %v2779, %v2780
    %v2782 = vand.u32 %v2781, 4294901760
    %2783 = vmatpush.msra.mxu0 %v2782
    %v2784 = vand.u32 %v243, 4294901760
    %v2785 = vsub.f32 %v243, %v2784
    %v2786 = vand.u32 %v2785, 4294901760
    %v2787 = vsub.f32 %v2785, %v2786
    %v2788 = vand.u32 %v2787, 4294901760
    %2789 = vmatpush.msra.mxu0 %v2788
    %v2790 = vand.u32 %v241, 4294901760
    %v2791 = vsub.f32 %v241, %v2790
    %v2792 = vand.u32 %v2791, 4294901760
    %v2793 = vsub.f32 %v2791, %v2792
    %v2794 = vand.u32 %v2793, 4294901760
    %2795 = vmatpush.msra.mxu0 %v2794
    %v2796 = vand.u32 %v141, 4294901760
    %2797 = vmatmul.f32.gmra.mxu0 %v2796
    %v2798 = vpop.f32.mrf.mxu0
    %v2799 = vadd.f32 %v2698, %v2798
    %2800 = vdwg.mxu0
    %v2801 = vand.u32 %v271, 4294901760
    %v2802 = vsub.f32 %v271, %v2801
    %2803 = vmatpush.msra.mxu0 %v2802
    %v2804 = vand.u32 %v269, 4294901760
    %v2805 = vsub.f32 %v269, %v2804
    %2806 = vmatpush.msra.mxu0 %v2805
    %v2807 = vand.u32 %v267, 4294901760
    %v2808 = vsub.f32 %v267, %v2807
    %2809 = vmatpush.msra.mxu0 %v2808
    %v2810 = vand.u32 %v265, 4294901760
    %v2811 = vsub.f32 %v265, %v2810
    %2812 = vmatpush.msra.mxu0 %v2811
    %v2813 = vand.u32 %v263, 4294901760
    %v2814 = vsub.f32 %v263, %v2813
    %2815 = vmatpush.msra.mxu0 %v2814
    %v2816 = vand.u32 %v261, 4294901760
    %v2817 = vsub.f32 %v261, %v2816
    %2818 = vmatpush.msra.mxu0 %v2817
    %v2819 = vand.u32 %v259, 4294901760
    %v2820 = vsub.f32 %v259, %v2819
    %2821 = vmatpush.msra.mxu0 %v2820
    %v2822 = vand.u32 %v257, 4294901760
    %v2823 = vsub.f32 %v257, %v2822
    %2824 = vmatpush.msra.mxu0 %v2823
    %v2825 = vand.u32 %v255, 4294901760
    %v2826 = vsub.f32 %v255, %v2825
    %2827 = vmatpush.msra.mxu0 %v2826
    %v2828 = vand.u32 %v253, 4294901760
    %v2829 = vsub.f32 %v253, %v2828
    %2830 = vmatpush.msra.mxu0 %v2829
    %v2831 = vand.u32 %v251, 4294901760
    %v2832 = vsub.f32 %v251, %v2831
    %2833 = vmatpush.msra.mxu0 %v2832
    %v2834 = vand.u32 %v249, 4294901760
    %v2835 = vsub.f32 %v249, %v2834
    %2836 = vmatpush.msra.mxu0 %v2835
    %v2837 = vand.u32 %v247, 4294901760
    %v2838 = vsub.f32 %v247, %v2837
    %2839 = vmatpush.msra.mxu0 %v2838
    %v2840 = vand.u32 %v245, 4294901760
    %v2841 = vsub.f32 %v245, %v2840
    %2842 = vmatpush.msra.mxu0 %v2841
    %v2843 = vand.u32 %v243, 4294901760
    %v2844 = vsub.f32 %v243, %v2843
    %2845 = vmatpush.msra.mxu0 %v2844
    %v2846 = vand.u32 %v241, 4294901760
    %v2847 = vsub.f32 %v241, %v2846
    %2848 = vmatpush.msra.mxu0 %v2847
    %v2849 = vand.u32 %v141, 4294901760
    %v2850 = vsub.f32 %v141, %v2849
    %2851 = vmatmul.f32.gmra.mxu0 %v2850
    %v2852 = vpop.f32.mrf.mxu0
    %v2853 = vadd.f32 %v2799, %v2852
    %2854 = vdwg.mxu0
    %v2855 = vand.u32 %v271, 4294901760
    %2856 = vmatpush.msra.mxu0 %v2855
    %v2857 = vand.u32 %v269, 4294901760
    %2858 = vmatpush.msra.mxu0 %v2857
    %v2859 = vand.u32 %v267, 4294901760
    %2860 = vmatpush.msra.mxu0 %v2859
    %v2861 = vand.u32 %v265, 4294901760
    %2862 = vmatpush.msra.mxu0 %v2861
    %v2863 = vand.u32 %v263, 4294901760
    %2864 = vmatpush.msra.mxu0 %v2863
    %v2865 = vand.u32 %v261, 4294901760
    %2866 = vmatpush.msra.mxu0 %v2865
    %v2867 = vand.u32 %v259, 4294901760
    %2868 = vmatpush.msra.mxu0 %v2867
    %v2869 = vand.u32 %v257, 4294901760
    %2870 = vmatpush.msra.mxu0 %v2869
    %v2871 = vand.u32 %v255, 4294901760
    %2872 = vmatpush.msra.mxu0 %v2871
    %v2873 = vand.u32 %v253, 4294901760
    %2874 = vmatpush.msra.mxu0 %v2873
    %v2875 = vand.u32 %v251, 4294901760
    %2876 = vmatpush.msra.mxu0 %v2875
    %v2877 = vand.u32 %v249, 4294901760
    %2878 = vmatpush.msra.mxu0 %v2877
    %v2879 = vand.u32 %v247, 4294901760
    %2880 = vmatpush.msra.mxu0 %v2879
    %v2881 = vand.u32 %v245, 4294901760
    %2882 = vmatpush.msra.mxu0 %v2881
    %v2883 = vand.u32 %v243, 4294901760
    %2884 = vmatpush.msra.mxu0 %v2883
    %v2885 = vand.u32 %v241, 4294901760
    %2886 = vmatpush.msra.mxu0 %v2885
    %v2887 = vand.u32 %v141, 4294901760
    %v2888 = vsub.f32 %v141, %v2887
    %v2889 = vand.u32 %v2888, 4294901760
    %2890 = vmatmul.f32.gmra.mxu0 %v2889
    %v2891 = vpop.f32.mrf.mxu0
    %v2892 = vadd.f32 %v2853, %v2891
    %2893 = vdwg.mxu0
    %v2894 = vand.u32 %v271, 4294901760
    %v2895 = vsub.f32 %v271, %v2894
    %v2896 = vand.u32 %v2895, 4294901760
    %2897 = vmatpush.msra.mxu0 %v2896
    %v2898 = vand.u32 %v269, 4294901760
    %v2899 = vsub.f32 %v269, %v2898
    %v2900 = vand.u32 %v2899, 4294901760
    %2901 = vmatpush.msra.mxu0 %v2900
    %v2902 = vand.u32 %v267, 4294901760
    %v2903 = vsub.f32 %v267, %v2902
    %v2904 = vand.u32 %v2903, 4294901760
    %2905 = vmatpush.msra.mxu0 %v2904
    %v2906 = vand.u32 %v265, 4294901760
    %v2907 = vsub.f32 %v265, %v2906
    %v2908 = vand.u32 %v2907, 4294901760
    %2909 = vmatpush.msra.mxu0 %v2908
    %v2910 = vand.u32 %v263, 4294901760
    %v2911 = vsub.f32 %v263, %v2910
    %v2912 = vand.u32 %v2911, 4294901760
    %2913 = vmatpush.msra.mxu0 %v2912
    %v2914 = vand.u32 %v261, 4294901760
    %v2915 = vsub.f32 %v261, %v2914
    %v2916 = vand.u32 %v2915, 4294901760
    %2917 = vmatpush.msra.mxu0 %v2916
    %v2918 = vand.u32 %v259, 4294901760
    %v2919 = vsub.f32 %v259, %v2918
    %v2920 = vand.u32 %v2919, 4294901760
    %2921 = vmatpush.msra.mxu0 %v2920
    %v2922 = vand.u32 %v257, 4294901760
    %v2923 = vsub.f32 %v257, %v2922
    %v2924 = vand.u32 %v2923, 4294901760
    %2925 = vmatpush.msra.mxu0 %v2924
    %v2926 = vand.u32 %v255, 4294901760
    %v2927 = vsub.f32 %v255, %v2926
    %v2928 = vand.u32 %v2927, 4294901760
    %2929 = vmatpush.msra.mxu0 %v2928
    %v2930 = vand.u32 %v253, 4294901760
    %v2931 = vsub.f32 %v253, %v2930
    %v2932 = vand.u32 %v2931, 4294901760
    %2933 = vmatpush.msra.mxu0 %v2932
    %v2934 = vand.u32 %v251, 4294901760
    %v2935 = vsub.f32 %v251, %v2934
    %v2936 = vand.u32 %v2935, 4294901760
    %2937 = vmatpush.msra.mxu0 %v2936
    %v2938 = vand.u32 %v249, 4294901760
    %v2939 = vsub.f32 %v249, %v2938
    %v2940 = vand.u32 %v2939, 4294901760
    %2941 = vmatpush.msra.mxu0 %v2940
    %v2942 = vand.u32 %v247, 4294901760
    %v2943 = vsub.f32 %v247, %v2942
    %v2944 = vand.u32 %v2943, 4294901760
    %2945 = vmatpush.msra.mxu0 %v2944
    %v2946 = vand.u32 %v245, 4294901760
    %v2947 = vsub.f32 %v245, %v2946
    %v2948 = vand.u32 %v2947, 4294901760
    %2949 = vmatpush.msra.mxu0 %v2948
    %v2950 = vand.u32 %v243, 4294901760
    %v2951 = vsub.f32 %v243, %v2950
    %v2952 = vand.u32 %v2951, 4294901760
    %2953 = vmatpush.msra.mxu0 %v2952
    %v2954 = vand.u32 %v241, 4294901760
    %v2955 = vsub.f32 %v241, %v2954
    %v2956 = vand.u32 %v2955, 4294901760
    %2957 = vmatpush.msra.mxu0 %v2956
    %v2958 = vand.u32 %v141, 4294901760
    %2959 = vmatmul.f32.gmra.mxu0 %v2958
    %v2960 = vpop.f32.mrf.mxu0
    %v2961 = vadd.f32 %v2892, %v2960
    %2962 = vdwg.mxu0
    %v2963 = vand.u32 %v271, 4294901760
    %2964 = vmatpush.msra.mxu0 %v2963
    %v2965 = vand.u32 %v269, 4294901760
    %2966 = vmatpush.msra.mxu0 %v2965
    %v2967 = vand.u32 %v267, 4294901760
    %2968 = vmatpush.msra.mxu0 %v2967
    %v2969 = vand.u32 %v265, 4294901760
    %2970 = vmatpush.msra.mxu0 %v2969
    %v2971 = vand.u32 %v263, 4294901760
    %2972 = vmatpush.msra.mxu0 %v2971
    %v2973 = vand.u32 %v261, 4294901760
    %2974 = vmatpush.msra.mxu0 %v2973
    %v2975 = vand.u32 %v259, 4294901760
    %2976 = vmatpush.msra.mxu0 %v2975
    %v2977 = vand.u32 %v257, 4294901760
    %2978 = vmatpush.msra.mxu0 %v2977
    %v2979 = vand.u32 %v255, 4294901760
    %2980 = vmatpush.msra.mxu0 %v2979
    %v2981 = vand.u32 %v253, 4294901760
    %2982 = vmatpush.msra.mxu0 %v2981
    %v2983 = vand.u32 %v251, 4294901760
    %2984 = vmatpush.msra.mxu0 %v2983
    %v2985 = vand.u32 %v249, 4294901760
    %2986 = vmatpush.msra.mxu0 %v2985
    %v2987 = vand.u32 %v247, 4294901760
    %2988 = vmatpush.msra.mxu0 %v2987
    %v2989 = vand.u32 %v245, 4294901760
    %2990 = vmatpush.msra.mxu0 %v2989
    %v2991 = vand.u32 %v243, 4294901760
    %2992 = vmatpush.msra.mxu0 %v2991
    %v2993 = vand.u32 %v241, 4294901760
    %2994 = vmatpush.msra.mxu0 %v2993
    %v2995 = vand.u32 %v141, 4294901760
    %2996 = vmatmul.f32.gmra.mxu0 %v2995
    %v2997 = vpop.f32.mrf.mxu0
    %v2998 = vadd.f32 %v2961, %v2997
    %2999 = vdwg.mxu0
    %v3000 = vxor.u32 %v1634, 2147483648
    %v3001 = vxor.u32 %v2998, 2147483648
    %v3002 = vmul.f32 %v3000, 1.442695
    %v3003 = vpow.pop %v3002
    %v3004 = vmul.f32 %v3001, 1.442695
    %v3005 = vpow.pop %v3004
    %v3006 = vadd.f32 %v3003, 1.0
    %v3007 = vadd.f32 %v3005, 1.0
    %v3008 = vrcp.pop %v3006
    %v3009 = vmul.f32 %v3006, %v3008
    %v3010 = vsub.f32 1.0, %v3009
    %v3011 = vmul.f32 %v3008, %v3010
    %v3012 = vadd.f32 %v3008, %v3011
    %vm3013 = vweird.f32 %v3006
    %vm3014 = vweird.f32 %v3008
    %vm3015 = vmor %vm3013, %vm3014
    %v3016 = vsel %vm3015, %v3008, %v3012
    %v3017 = vand.u32 2147483647, %v3006
    %vm3018 = vcmp.eq.f32.partialorder %v3017, 8.507059e+37
    %v3019 = vand.u32 %v3006, 2147483648
    %v3020 = vor.u32 1.1754944e-38, %v3019
    %v3021 = vsel %vm3018, %v3020, %v3016
    %v3022 = vmul.f32 1.0, %v3021
    %v3023 = vrcp.pop %v3007
    %v3024 = vmul.f32 %v3007, %v3023
    %v3025 = vsub.f32 1.0, %v3024
    %v3026 = vmul.f32 %v3023, %v3025
    %v3027 = vadd.f32 %v3023, %v3026
    %vm3028 = vweird.f32 %v3007
    %vm3029 = vweird.f32 %v3023
    %vm3030 = vmor %vm3028, %vm3029
    %v3031 = vsel %vm3030, %v3023, %v3027
    %v3032 = vand.u32 2147483647, %v3007
    %vm3033 = vcmp.eq.f32.partialorder %v3032, 8.507059e+37
    %v3034 = vand.u32 %v3007, 2147483648
    %v3035 = vor.u32 1.1754944e-38, %v3034
    %v3036 = vsel %vm3033, %v3035, %v3031
    %v3037 = vmul.f32 1.0, %v3036
    %v3040 = vrot.slane %v3037, 7
    %vm3041 = vcmask 1040384
    %v3042 = vsel %vm3041, %v3022, %v3040
    %v3043 = vsel %vm131, %v3022, %v3040
    %v3044 = vrot.slane %v3043, 1
    %v3047 = vlaneseq
    %vm3048 = vcmp.ge.s32.totalorder %v3047, 0
    %vm3049 = vcmp.lt.s32.totalorder %v3047, 256
    %vm3050 = vmand %vm3048, %vm3049
    %3051 = vst.msk [vmem:[#allocation7] sm:$0x3] %vm3050, %v3042
    %3052 = vst.msk [vmem:[#allocation7 + $0x2] sm:$0x3] %vm3050, %v3044
    // Predicated region
    $region18: #{tpu_custom_call.1} parent=1 // pred_check
      _
    $region19: #{tpu_custom_call.1} parent=1 // pred_check_branch
      %3054 = sbr.rel (0) target = $region21
    $region20: #{tpu_custom_call.1} parent=1 // pred_region
      %3056 = vsyncadd [#allocation4], 0
      %s3057 = sshll.u32 [#allocation7], 4
      %s3058 = int_to_ptr.vmem [resolvable:$true] %s3057
      %s3059 = sshll.u32 %s2, 4
      %s3060 = int_to_ptr.hbm [resolvable:$true] %s3059
      %3065 = dma.vmem_to_hbm [thread:$0]  %s3058, 64, %s3060, [#allocation4], 32, 32, 2
    $region21: #{tpu_custom_call.1} parent=1 // pred_fallthru
      _
    // Predicated region
    $region22: #{tpu_custom_call.1} parent=1 // pred_check
      _
    $region23: #{tpu_custom_call.1} parent=1 // pred_check_branch
      %3067 = sbr.rel (0) target = $region25
    $region24: #{tpu_custom_call.1} parent=1 // pred_region
      %3069 = dma.done [#allocation4], 64
    $region25: #{tpu_custom_call.1} parent=1 // pred_fallthru
      _
    %3070 = vsyncpa [#allocation3], 1
    %3071 = vsyncpa [#allocation6], 1
    %3072 = vsyncpa [#allocation4], 1

</llo_original>
